<compile_context>
chip_gen: v7x
topology: tpu7x:2x2x1
jax: 0.10.0
libtpu: 0.0.40
codegen_flags: <defaults>
</compile_context>

<pallas_src>
from functools import partial

import numpy as np
import jax
import jax.numpy as jnp
from jax.experimental import pallas as pl
from jax.experimental.pallas import tpu as pltpu

CHN_IN = 4
CHN = 8
N_CLASSES = 10


# ----------------------------------------------------------------------------
# The fused network kernel (stem + layer0 + layer1 + avgpool + fc)
# ----------------------------------------------------------------------------
def _resnet_fused_kernel(x_ref, mask_a_ref, mask_b_ref, sel_ref, pool_ref,
                         stem_w_ref, stem_b_ref,
                         l0c1_w_ref, l0c2_w_ref,
                         l1c1_w_ref, l1c2_w_ref,
                         ds_w_ref, ds_b_ref,
                         fc_w_ref, fc_b_ref,
                         out_ref, *, batch, chn_in, img_w):
    f32, bf16 = jnp.float32, jnp.bfloat16

    # --- input rearrange: (B*Cin, HW) -> lane-dense (Cin_pad, B*HW) ---------
    xv = x_ref[...]                                    # (B*Cin, HW) f32
    hw = xv.shape[1]                                   # pixels per image
    m = batch * hw
    x = jnp.concatenate(
        [xv[b * chn_in:(b + 1) * chn_in, :] for b in range(batch)], axis=1)
    if CHN > chn_in:                                   # pad channels 4 -> 8
        x = jnp.concatenate([x, jnp.zeros((CHN - chn_in, m), f32)], axis=0)

    mask_a = mask_a_ref[...]                           # (9, M)   f32
    mask_b = mask_b_ref[...]                           # (9, M/4) f32

    def conv3x3(act, w_ref, masks, w_img):
        """act: (Cin, M) f32; w_ref: (Cout, 9*Cin) bf16; masks: (9, M) f32.

        Output pixel (b,i,j) (flat idx m) reads input (i+di-1, j+dj-1), i.e.
        flat m+off with off=(di-1)*w_img+(dj-1): a static lane rotation by
        (-off) mod M plus a 0/1 boundary mask (which also kills the
        cross-row / cross-batch wrap-around).  All 9 taps are stacked along
        sublanes into one patch slab feeding a single packed MXU matmul.
        """
        n = act.shape[1]
        taps = []
        for tap in range(9):
            di, dj = divmod(tap, 3)
            off = (di - 1) * w_img + (dj - 1)
            shift = (-off) % n
            src = pltpu.roll(act, shift=shift, axis=1) if shift else act
            if not (di == 1 and dj == 1):              # center tap always valid
                src = src * masks[tap:tap + 1, :]
            taps.append(src)
        patch = jnp.concatenate(taps, axis=0).astype(bf16)   # (9*Cin, M)
        return jnp.dot(w_ref[...], patch, preferred_element_type=f32)

    # --- stem: conv3x3(4->8, s1, p1) + folded BatchNorm + ReLU --------------
    a = conv3x3(x, stem_w_ref, mask_a, img_w) + stem_b_ref[...]
    a = jnp.maximum(a, 0.0)                                         # (8, 512)

    # --- layer 0: BasicBlock(8->8, s1), norm=Identity, no downsample --------
    h = jnp.maximum(conv3x3(a, l0c1_w_ref, mask_a, img_w), 0.0)
    a = jnp.maximum(conv3x3(h, l0c2_w_ref, mask_a, img_w) + a, 0.0)

    # --- layer 1: BasicBlock(8->16, s2), downsample = conv1x1(s2) + BN ------
    # Reassociate the 1x1 downsample and share ONE stride-2 selection dot for
    # both the identity path and the conv1 path.
    ds_pre = jnp.dot(ds_w_ref[...], a.astype(bf16),
                     preferred_element_type=f32)                    # (16, 512)
    h_full = conv3x3(a, l1c1_w_ref, mask_a, img_w)                  # (16, 512)
    stacked = jnp.concatenate([ds_pre, h_full], axis=0).astype(bf16)  # (32,512)
    sel = sel_ref[...]                                  # per-image (HW, HW/4)
    sel_out = jnp.concatenate(
        [jnp.dot(stacked[:, b * hw:(b + 1) * hw], sel,
                 preferred_element_type=f32) for b in range(batch)],
        axis=1)                                                     # (32, 128)
    ident = sel_out[:2 * CHN, :] + ds_b_ref[...]                    # (16, 128)
    h = jnp.maximum(sel_out[2 * CHN:, :], 0.0)                      # (16, 128)
    a = jnp.maximum(conv3x3(h, l1c2_w_ref, mask_b, img_w // 2) + ident, 0.0)

    # --- AdaptiveAvgPool2d((1,1)) + flatten + Linear -> (B, n_classes) ------
    pooled = jax.lax.dot_general(pool_ref[...], a,
                                 (((1,), (1,)), ((), ())),
                                 preferred_element_type=f32)        # (B, 16)
    out_ref[...] = (jnp.dot(pooled, fc_w_ref[...],
                            preferred_element_type=f32) + fc_b_ref[...])


# ----------------------------------------------------------------------------
# Jitted forward wrapper (no layout launches: only a free contiguous reshape)
# ----------------------------------------------------------------------------
def resnet_forward(prep, x_nchw):
    """prep: output of prepare_params(); x_nchw: (B, CHN_IN, H, W)."""
    b, c, h, w = x_nchw.shape
    # Contiguous reshape only (no transpose); the lane-dense rearrangement is
    # done inside the kernel, so the fused kernel is the only launch.
    x = x_nchw.reshape(b * c, h * w).astype(jnp.float32)

    inputs = [x,
              prep["mask_hw"], prep["mask_hw2"], prep["sel"], prep["pool_t"],
              prep["stem_w"], prep["stem_b"],
              prep["l0c1_w"], prep["l0c2_w"],
              prep["l1c1_w"], prep["l1c2_w"],
              prep["ds_w"], prep["ds_b"],
              prep["fc_w"], prep["fc_b"]]
    n_cls = prep["fc_w"].shape[1]

    return pl.pallas_call(
        partial(_resnet_fused_kernel, batch=b, chn_in=c, img_w=w),
        out_shape=jax.ShapeDtypeStruct((b, n_cls), jnp.float32),
        in_specs=[pl.BlockSpec(memory_space=pltpu.MemorySpace.VMEM)] * len(inputs),
        out_specs=pl.BlockSpec(memory_space=pltpu.MemorySpace.VMEM),
    )(*inputs)                                          # (B, n_classes)


# ----------------------------------------------------------------------------
# One-time host-side preparation: weight packing, BN folding, index matrices
# ----------------------------------------------------------------------------
def fold_bn(bn, eps=1e-5):
    """Fold eval-mode BatchNorm into per-channel (scale, shift)."""
    gamma, beta, mean, var = bn
    s = gamma * jax.lax.rsqrt(var + eps)
    return s, beta - mean * s


def _pack3x3(w_oihw, cin_pad=None):
    """PyTorch (Cout, Cin, 3, 3) -> packed (Cout, 9*Cin_pad), K = tap*Cin_pad + c,
    matching the in-kernel patch-slab row order (tap-major, channel-minor)."""
    w = np.asarray(w_oihw)
    o, cin, kh, kw = w.shape
    cp = cin if cin_pad is None else cin_pad
    packed = np.zeros((o, kh * kw, cp), np.float32)
    packed[:, :, :cin] = np.transpose(w, (0, 2, 3, 1)).reshape(o, kh * kw, cin)
    return jnp.asarray(packed.reshape(o, kh * kw * cp))


def _tap_masks(batch, h, w):
    """(9, B*H*W) validity of each 3x3 tap's source pixel (zero padding)."""
    m = batch * h * w
    ii = (np.arange(m) % (h * w)) // w
    jj = np.arange(m) % w
    out = np.zeros((9, m), np.float32)
    for tap in range(9):
        di, dj = divmod(tap, 3)
        out[tap] = ((ii + di - 1 >= 0) & (ii + di - 1 < h) &
                    (jj + dj - 1 >= 0) & (jj + dj - 1 < w))
    return jnp.asarray(out)


def _stride2_sel(h, w):
    """Per-image (H*W, H*W/4) 0/1 matrix selecting even-even pixels (stride 2)."""
    ho, wo = h // 2, w // 2
    sel = np.zeros((h * w, ho * wo), np.float32)
    for io in range(ho):
        for jo in range(wo):
            sel[2 * io * w + 2 * jo, io * wo + jo] = 1.0
    return jnp.asarray(sel, dtype=jnp.bfloat16)         # exact for 0/1 values


def _pool_t(batch, h2, w2):
    """(B, B*H2*W2) matrix implementing per-image global average pooling."""
    hw = h2 * w2
    p = np.zeros((batch, batch * hw), np.float32)
    for b in range(batch):
        p[b, b * hw:(b + 1) * hw] = 1.0 / hw
    return jnp.asarray(p)


def prepare_params(params, batch, height, width):
    """Done once outside jit: pack weights, fold BN, build index matrices."""
    f32, bf16 = jnp.float32, jnp.bfloat16
    stem_s, stem_t = fold_bn(params["stem_bn"])
    ds_s, ds_t = fold_bn(params["l1_ds_bn"])
    return {
        # BN scale folded into conv weights; only per-channel bias remains.
        # Conv / downsample weights and sel are bf16 MXU operands (f32 accum).
        "stem_w": (_pack3x3(params["stem_w"], cin_pad=CHN)
                   * stem_s[:, None]).astype(bf16),
        "stem_b": stem_t.reshape(-1, 1).astype(f32),
        "l0c1_w": _pack3x3(params["l0_conv1"]).astype(bf16),
        "l0c2_w": _pack3x3(params["l0_conv2"]).astype(bf16),
        "l1c1_w": _pack3x3(params["l1_conv1"]).astype(bf16),
        "l1c2_w": _pack3x3(params["l1_conv2"]).astype(bf16),
        "ds_w": (params["l1_ds_w"].reshape(2 * CHN, CHN)
                 * ds_s[:, None]).astype(bf16),
        "ds_b": ds_t.reshape(-1, 1).astype(f32),
        # NOTE: kernel expects fc_w as (in_features, n_classes); a PyTorch
        # nn.Linear.weight (out, in) checkpoint must be transposed here.
        "fc_w": params["fc_w"].astype(f32),
        "fc_b": params["fc_b"].reshape(1, -1).astype(f32),
        # Static index / pooling matrices (depend only on shapes).
        "mask_hw": _tap_masks(batch, height, width),
        "mask_hw2": _tap_masks(batch, height // 2, width // 2),
        "sel": _stride2_sel(height, width),
        "pool_t": _pool_t(batch, height // 2, width // 2),
    }


# ----------------------------------------------------------------------------
# Deterministic parameter init (synthetic; no checkpoint loading)
# ----------------------------------------------------------------------------
def make_params(key):
    ks = jax.random.split(key, 12)

    def w(k, shape, scale=0.2):
        return scale * jax.random.normal(k, shape, dtype=jnp.float32)

    def bn(kg, kb, c):
        return (1.0 + 0.1 * jax.random.normal(kg, (c,), jnp.float32),  # gamma
                0.1 * jax.random.normal(kb, (c,), jnp.float32),        # beta
                jnp.zeros((c,), jnp.float32),                          # running mean
                jnp.ones((c,), jnp.float32))                           # running var

    return {
        "stem_w": w(ks[0], (CHN, CHN_IN, 3, 3)),
        "stem_bn": bn(ks[1], ks[2], CHN),
        "l0_conv1": w(ks[3], (CHN, CHN, 3, 3)),
        "l0_conv2": w(ks[4], (CHN, CHN, 3, 3)),
        "l1_conv1": w(ks[5], (2 * CHN, CHN, 3, 3)),
        "l1_conv2": w(ks[6], (2 * CHN, 2 * CHN, 3, 3)),
        "l1_ds_w": w(ks[7], (2 * CHN, CHN, 1, 1)),
        "l1_ds_bn": bn(ks[8], ks[9], 2 * CHN),
        "fc_w": w(ks[10], (2 * CHN, N_CLASSES)),   # stored as (in, out)
        "fc_b": w(ks[11], (N_CLASSES,), scale=0.05),
    }


if __name__ == "__main__":
    key = jax.random.PRNGKey(0)
    pkey, xkey = jax.random.split(key)
    params = make_params(pkey)
    x = jax.random.normal(xkey, (2, CHN_IN, 16, 16), dtype=jnp.float32)  # NCHW

    prep = prepare_params(params, batch=2, height=16, width=16)
    logits = jax.jit(resnet_forward)(prep, x)
    logits = jax.block_until_ready(logits)

    assert logits.shape == (2, N_CLASSES), logits.shape
    assert bool(jnp.all(jnp.isfinite(logits)))
    print("KERNEL_OK")
</pallas_src>

<mosaic_0001>
module attributes {stable_mosaic.version = 11 : i64} {
  func.func @_resnet_fused_kernel(%arg0: memref<8x256xf32, #tpu.memory_space<vmem>>, %arg1: memref<9x512xf32, #tpu.memory_space<vmem>>, %arg2: memref<9x128xf32, #tpu.memory_space<vmem>>, %arg3: memref<256x64xbf16, #tpu.memory_space<vmem>>, %arg4: memref<2x128xf32, #tpu.memory_space<vmem>>, %arg5: memref<8x72xbf16, #tpu.memory_space<vmem>>, %arg6: memref<8x1xf32, #tpu.memory_space<vmem>>, %arg7: memref<8x72xbf16, #tpu.memory_space<vmem>>, %arg8: memref<8x72xbf16, #tpu.memory_space<vmem>>, %arg9: memref<16x72xbf16, #tpu.memory_space<vmem>>, %arg10: memref<16x144xbf16, #tpu.memory_space<vmem>>, %arg11: memref<16x8xbf16, #tpu.memory_space<vmem>>, %arg12: memref<16x1xf32, #tpu.memory_space<vmem>>, %arg13: memref<16x10xf32, #tpu.memory_space<vmem>>, %arg14: memref<1x10xf32, #tpu.memory_space<vmem>>, %arg15: memref<2x10xf32, #tpu.memory_space<vmem>>) attributes {dimension_semantics = [], scalar_prefetch = 0 : i64, scratch_operands = 0 : i64, tpu.core_type = #tpu.core_type<tc>} {
    %c0 = arith.constant 0 : index
    %c0_0 = arith.constant 0 : index
    %0 = vector.load %arg0[%c0, %c0_0] : memref<8x256xf32, #tpu.memory_space<vmem>>, vector<8x256xf32>
    %1 = vector.extract_strided_slice %0 {offsets = [0, 0], sizes = [4, 256], strides = [1, 1]} : vector<8x256xf32> to vector<4x256xf32>
    %2 = vector.extract_strided_slice %0 {offsets = [4, 0], sizes = [4, 256], strides = [1, 1]} : vector<8x256xf32> to vector<4x256xf32>
    %3 = tpu.concatenate %1, %2 in 1 : vector<4x256xf32>, vector<4x256xf32> -> vector<4x512xf32>
    %cst = arith.constant 0.000000e+00 : f32
    %4 = vector.broadcast %cst : f32 to vector<4x512xf32>
    %5 = tpu.concatenate %3, %4 in 0 : vector<4x512xf32>, vector<4x512xf32> -> vector<8x512xf32>
    %c0_1 = arith.constant 0 : index
    %c0_2 = arith.constant 0 : index
    %6 = vector.load %arg1[%c0_1, %c0_2] : memref<9x512xf32, #tpu.memory_space<vmem>>, vector<9x512xf32>
    %c0_3 = arith.constant 0 : index
    %c0_4 = arith.constant 0 : index
    %7 = vector.load %arg2[%c0_3, %c0_4] : memref<9x128xf32, #tpu.memory_space<vmem>>, vector<9x128xf32>
    %c17_i32 = arith.constant 17 : i32
    %8 = tpu.dynamic_rotate %5 by %c17_i32 dim 1 : vector<8x512xf32>, i32 -> vector<8x512xf32>
    %9 = vector.extract_strided_slice %6 {offsets = [0, 0], sizes = [1, 512], strides = [1, 1]} : vector<9x512xf32> to vector<1x512xf32>
    %10 = vector.broadcast %9 : vector<1x512xf32> to vector<8x512xf32>
    %11 = arith.mulf %8, %10 : vector<8x512xf32>
    %c16_i32 = arith.constant 16 : i32
    %12 = tpu.dynamic_rotate %5 by %c16_i32 dim 1 : vector<8x512xf32>, i32 -> vector<8x512xf32>
    %13 = vector.extract_strided_slice %6 {offsets = [1, 0], sizes = [1, 512], strides = [1, 1]} : vector<9x512xf32> to vector<1x512xf32>
    %14 = vector.broadcast %13 : vector<1x512xf32> to vector<8x512xf32>
    %15 = arith.mulf %12, %14 : vector<8x512xf32>
    %c15_i32 = arith.constant 15 : i32
    %16 = tpu.dynamic_rotate %5 by %c15_i32 dim 1 : vector<8x512xf32>, i32 -> vector<8x512xf32>
    %17 = vector.extract_strided_slice %6 {offsets = [2, 0], sizes = [1, 512], strides = [1, 1]} : vector<9x512xf32> to vector<1x512xf32>
    %18 = vector.broadcast %17 : vector<1x512xf32> to vector<8x512xf32>
    %19 = arith.mulf %16, %18 : vector<8x512xf32>
    %c1_i32 = arith.constant 1 : i32
    %20 = tpu.dynamic_rotate %5 by %c1_i32 dim 1 : vector<8x512xf32>, i32 -> vector<8x512xf32>
    %21 = vector.extract_strided_slice %6 {offsets = [3, 0], sizes = [1, 512], strides = [1, 1]} : vector<9x512xf32> to vector<1x512xf32>
    %22 = vector.broadcast %21 : vector<1x512xf32> to vector<8x512xf32>
    %23 = arith.mulf %20, %22 : vector<8x512xf32>
    %c511_i32 = arith.constant 511 : i32
    %24 = tpu.dynamic_rotate %5 by %c511_i32 dim 1 : vector<8x512xf32>, i32 -> vector<8x512xf32>
    %25 = vector.extract_strided_slice %6 {offsets = [5, 0], sizes = [1, 512], strides = [1, 1]} : vector<9x512xf32> to vector<1x512xf32>
    %26 = vector.broadcast %25 : vector<1x512xf32> to vector<8x512xf32>
    %27 = arith.mulf %24, %26 : vector<8x512xf32>
    %c497_i32 = arith.constant 497 : i32
    %28 = tpu.dynamic_rotate %5 by %c497_i32 dim 1 : vector<8x512xf32>, i32 -> vector<8x512xf32>
    %29 = vector.extract_strided_slice %6 {offsets = [6, 0], sizes = [1, 512], strides = [1, 1]} : vector<9x512xf32> to vector<1x512xf32>
    %30 = vector.broadcast %29 : vector<1x512xf32> to vector<8x512xf32>
    %31 = arith.mulf %28, %30 : vector<8x512xf32>
    %c496_i32 = arith.constant 496 : i32
    %32 = tpu.dynamic_rotate %5 by %c496_i32 dim 1 : vector<8x512xf32>, i32 -> vector<8x512xf32>
    %33 = vector.extract_strided_slice %6 {offsets = [7, 0], sizes = [1, 512], strides = [1, 1]} : vector<9x512xf32> to vector<1x512xf32>
    %34 = vector.broadcast %33 : vector<1x512xf32> to vector<8x512xf32>
    %35 = arith.mulf %32, %34 : vector<8x512xf32>
    %c495_i32 = arith.constant 495 : i32
    %36 = tpu.dynamic_rotate %5 by %c495_i32 dim 1 : vector<8x512xf32>, i32 -> vector<8x512xf32>
    %37 = vector.extract_strided_slice %6 {offsets = [8, 0], sizes = [1, 512], strides = [1, 1]} : vector<9x512xf32> to vector<1x512xf32>
    %38 = vector.broadcast %37 : vector<1x512xf32> to vector<8x512xf32>
    %39 = arith.mulf %36, %38 : vector<8x512xf32>
    %40 = tpu.concatenate %11, %15, %19, %23, %5, %27, %31, %35, %39 in 0 : vector<8x512xf32>, vector<8x512xf32>, vector<8x512xf32>, vector<8x512xf32>, vector<8x512xf32>, vector<8x512xf32>, vector<8x512xf32>, vector<8x512xf32>, vector<8x512xf32> -> vector<72x512xf32>
    %41 = arith.truncf %40 : vector<72x512xf32> to vector<72x512xbf16>
    %c0_5 = arith.constant 0 : index
    %c0_6 = arith.constant 0 : index
    %42 = vector.load %arg5[%c0_5, %c0_6] : memref<8x72xbf16, #tpu.memory_space<vmem>>, vector<8x72xbf16>
    %cst_7 = arith.constant dense<0.000000e+00> : vector<8x512xf32>
    %43 = tpu.matmul %42, %41, %cst_7 {dimension_numbers = #tpu.dot_dimension_numbers<[1], [0], [0], [1], [0, 0, 1, 1], [], []>} : vector<8x72xbf16>, vector<72x512xbf16>, vector<8x512xf32> -> vector<8x512xf32>
    %c0_8 = arith.constant 0 : index
    %c0_9 = arith.constant 0 : index
    %44 = vector.load %arg6[%c0_8, %c0_9] : memref<8x1xf32, #tpu.memory_space<vmem>>, vector<8x1xf32>
    %45 = vector.broadcast %44 : vector<8x1xf32> to vector<8x512xf32>
    %46 = arith.addf %43, %45 : vector<8x512xf32>
    %cst_10 = arith.constant 0.000000e+00 : f32
    %47 = vector.broadcast %cst_10 : f32 to vector<8x512xf32>
    %48 = arith.maximumf %46, %47 : vector<8x512xf32>
    %c17_i32_11 = arith.constant 17 : i32
    %49 = tpu.dynamic_rotate %48 by %c17_i32_11 dim 1 : vector<8x512xf32>, i32 -> vector<8x512xf32>
    %50 = vector.extract_strided_slice %6 {offsets = [0, 0], sizes = [1, 512], strides = [1, 1]} : vector<9x512xf32> to vector<1x512xf32>
    %51 = vector.broadcast %50 : vector<1x512xf32> to vector<8x512xf32>
    %52 = arith.mulf %49, %51 : vector<8x512xf32>
    %c16_i32_12 = arith.constant 16 : i32
    %53 = tpu.dynamic_rotate %48 by %c16_i32_12 dim 1 : vector<8x512xf32>, i32 -> vector<8x512xf32>
    %54 = vector.extract_strided_slice %6 {offsets = [1, 0], sizes = [1, 512], strides = [1, 1]} : vector<9x512xf32> to vector<1x512xf32>
    %55 = vector.broadcast %54 : vector<1x512xf32> to vector<8x512xf32>
    %56 = arith.mulf %53, %55 : vector<8x512xf32>
    %c15_i32_13 = arith.constant 15 : i32
    %57 = tpu.dynamic_rotate %48 by %c15_i32_13 dim 1 : vector<8x512xf32>, i32 -> vector<8x512xf32>
    %58 = vector.extract_strided_slice %6 {offsets = [2, 0], sizes = [1, 512], strides = [1, 1]} : vector<9x512xf32> to vector<1x512xf32>
    %59 = vector.broadcast %58 : vector<1x512xf32> to vector<8x512xf32>
    %60 = arith.mulf %57, %59 : vector<8x512xf32>
    %c1_i32_14 = arith.constant 1 : i32
    %61 = tpu.dynamic_rotate %48 by %c1_i32_14 dim 1 : vector<8x512xf32>, i32 -> vector<8x512xf32>
    %62 = vector.extract_strided_slice %6 {offsets = [3, 0], sizes = [1, 512], strides = [1, 1]} : vector<9x512xf32> to vector<1x512xf32>
    %63 = vector.broadcast %62 : vector<1x512xf32> to vector<8x512xf32>
    %64 = arith.mulf %61, %63 : vector<8x512xf32>
    %c511_i32_15 = arith.constant 511 : i32
    %65 = tpu.dynamic_rotate %48 by %c511_i32_15 dim 1 : vector<8x512xf32>, i32 -> vector<8x512xf32>
    %66 = vector.extract_strided_slice %6 {offsets = [5, 0], sizes = [1, 512], strides = [1, 1]} : vector<9x512xf32> to vector<1x512xf32>
    %67 = vector.broadcast %66 : vector<1x512xf32> to vector<8x512xf32>
    %68 = arith.mulf %65, %67 : vector<8x512xf32>
    %c497_i32_16 = arith.constant 497 : i32
    %69 = tpu.dynamic_rotate %48 by %c497_i32_16 dim 1 : vector<8x512xf32>, i32 -> vector<8x512xf32>
    %70 = vector.extract_strided_slice %6 {offsets = [6, 0], sizes = [1, 512], strides = [1, 1]} : vector<9x512xf32> to vector<1x512xf32>
    %71 = vector.broadcast %70 : vector<1x512xf32> to vector<8x512xf32>
    %72 = arith.mulf %69, %71 : vector<8x512xf32>
    %c496_i32_17 = arith.constant 496 : i32
    %73 = tpu.dynamic_rotate %48 by %c496_i32_17 dim 1 : vector<8x512xf32>, i32 -> vector<8x512xf32>
    %74 = vector.extract_strided_slice %6 {offsets = [7, 0], sizes = [1, 512], strides = [1, 1]} : vector<9x512xf32> to vector<1x512xf32>
    %75 = vector.broadcast %74 : vector<1x512xf32> to vector<8x512xf32>
    %76 = arith.mulf %73, %75 : vector<8x512xf32>
    %c495_i32_18 = arith.constant 495 : i32
    %77 = tpu.dynamic_rotate %48 by %c495_i32_18 dim 1 : vector<8x512xf32>, i32 -> vector<8x512xf32>
    %78 = vector.extract_strided_slice %6 {offsets = [8, 0], sizes = [1, 512], strides = [1, 1]} : vector<9x512xf32> to vector<1x512xf32>
    %79 = vector.broadcast %78 : vector<1x512xf32> to vector<8x512xf32>
    %80 = arith.mulf %77, %79 : vector<8x512xf32>
    %81 = tpu.concatenate %52, %56, %60, %64, %48, %68, %72, %76, %80 in 0 : vector<8x512xf32>, vector<8x512xf32>, vector<8x512xf32>, vector<8x512xf32>, vector<8x512xf32>, vector<8x512xf32>, vector<8x512xf32>, vector<8x512xf32>, vector<8x512xf32> -> vector<72x512xf32>
    %82 = arith.truncf %81 : vector<72x512xf32> to vector<72x512xbf16>
    %c0_19 = arith.constant 0 : index
    %c0_20 = arith.constant 0 : index
    %83 = vector.load %arg7[%c0_19, %c0_20] : memref<8x72xbf16, #tpu.memory_space<vmem>>, vector<8x72xbf16>
    %cst_21 = arith.constant dense<0.000000e+00> : vector<8x512xf32>
    %84 = tpu.matmul %83, %82, %cst_21 {dimension_numbers = #tpu.dot_dimension_numbers<[1], [0], [0], [1], [0, 0, 1, 1], [], []>} : vector<8x72xbf16>, vector<72x512xbf16>, vector<8x512xf32> -> vector<8x512xf32>
    %cst_22 = arith.constant 0.000000e+00 : f32
    %85 = vector.broadcast %cst_22 : f32 to vector<8x512xf32>
    %86 = arith.maximumf %84, %85 : vector<8x512xf32>
    %c17_i32_23 = arith.constant 17 : i32
    %87 = tpu.dynamic_rotate %86 by %c17_i32_23 dim 1 : vector<8x512xf32>, i32 -> vector<8x512xf32>
    %88 = vector.extract_strided_slice %6 {offsets = [0, 0], sizes = [1, 512], strides = [1, 1]} : vector<9x512xf32> to vector<1x512xf32>
    %89 = vector.broadcast %88 : vector<1x512xf32> to vector<8x512xf32>
    %90 = arith.mulf %87, %89 : vector<8x512xf32>
    %c16_i32_24 = arith.constant 16 : i32
    %91 = tpu.dynamic_rotate %86 by %c16_i32_24 dim 1 : vector<8x512xf32>, i32 -> vector<8x512xf32>
    %92 = vector.extract_strided_slice %6 {offsets = [1, 0], sizes = [1, 512], strides = [1, 1]} : vector<9x512xf32> to vector<1x512xf32>
    %93 = vector.broadcast %92 : vector<1x512xf32> to vector<8x512xf32>
    %94 = arith.mulf %91, %93 : vector<8x512xf32>
    %c15_i32_25 = arith.constant 15 : i32
    %95 = tpu.dynamic_rotate %86 by %c15_i32_25 dim 1 : vector<8x512xf32>, i32 -> vector<8x512xf32>
    %96 = vector.extract_strided_slice %6 {offsets = [2, 0], sizes = [1, 512], strides = [1, 1]} : vector<9x512xf32> to vector<1x512xf32>
    %97 = vector.broadcast %96 : vector<1x512xf32> to vector<8x512xf32>
    %98 = arith.mulf %95, %97 : vector<8x512xf32>
    %c1_i32_26 = arith.constant 1 : i32
    %99 = tpu.dynamic_rotate %86 by %c1_i32_26 dim 1 : vector<8x512xf32>, i32 -> vector<8x512xf32>
    %100 = vector.extract_strided_slice %6 {offsets = [3, 0], sizes = [1, 512], strides = [1, 1]} : vector<9x512xf32> to vector<1x512xf32>
    %101 = vector.broadcast %100 : vector<1x512xf32> to vector<8x512xf32>
    %102 = arith.mulf %99, %101 : vector<8x512xf32>
    %c511_i32_27 = arith.constant 511 : i32
    %103 = tpu.dynamic_rotate %86 by %c511_i32_27 dim 1 : vector<8x512xf32>, i32 -> vector<8x512xf32>
    %104 = vector.extract_strided_slice %6 {offsets = [5, 0], sizes = [1, 512], strides = [1, 1]} : vector<9x512xf32> to vector<1x512xf32>
    %105 = vector.broadcast %104 : vector<1x512xf32> to vector<8x512xf32>
    %106 = arith.mulf %103, %105 : vector<8x512xf32>
    %c497_i32_28 = arith.constant 497 : i32
    %107 = tpu.dynamic_rotate %86 by %c497_i32_28 dim 1 : vector<8x512xf32>, i32 -> vector<8x512xf32>
    %108 = vector.extract_strided_slice %6 {offsets = [6, 0], sizes = [1, 512], strides = [1, 1]} : vector<9x512xf32> to vector<1x512xf32>
    %109 = vector.broadcast %108 : vector<1x512xf32> to vector<8x512xf32>
    %110 = arith.mulf %107, %109 : vector<8x512xf32>
    %c496_i32_29 = arith.constant 496 : i32
    %111 = tpu.dynamic_rotate %86 by %c496_i32_29 dim 1 : vector<8x512xf32>, i32 -> vector<8x512xf32>
    %112 = vector.extract_strided_slice %6 {offsets = [7, 0], sizes = [1, 512], strides = [1, 1]} : vector<9x512xf32> to vector<1x512xf32>
    %113 = vector.broadcast %112 : vector<1x512xf32> to vector<8x512xf32>
    %114 = arith.mulf %111, %113 : vector<8x512xf32>
    %c495_i32_30 = arith.constant 495 : i32
    %115 = tpu.dynamic_rotate %86 by %c495_i32_30 dim 1 : vector<8x512xf32>, i32 -> vector<8x512xf32>
    %116 = vector.extract_strided_slice %6 {offsets = [8, 0], sizes = [1, 512], strides = [1, 1]} : vector<9x512xf32> to vector<1x512xf32>
    %117 = vector.broadcast %116 : vector<1x512xf32> to vector<8x512xf32>
    %118 = arith.mulf %115, %117 : vector<8x512xf32>
    %119 = tpu.concatenate %90, %94, %98, %102, %86, %106, %110, %114, %118 in 0 : vector<8x512xf32>, vector<8x512xf32>, vector<8x512xf32>, vector<8x512xf32>, vector<8x512xf32>, vector<8x512xf32>, vector<8x512xf32>, vector<8x512xf32>, vector<8x512xf32> -> vector<72x512xf32>
    %120 = arith.truncf %119 : vector<72x512xf32> to vector<72x512xbf16>
    %c0_31 = arith.constant 0 : index
    %c0_32 = arith.constant 0 : index
    %121 = vector.load %arg8[%c0_31, %c0_32] : memref<8x72xbf16, #tpu.memory_space<vmem>>, vector<8x72xbf16>
    %cst_33 = arith.constant dense<0.000000e+00> : vector<8x512xf32>
    %122 = tpu.matmul %121, %120, %cst_33 {dimension_numbers = #tpu.dot_dimension_numbers<[1], [0], [0], [1], [0, 0, 1, 1], [], []>} : vector<8x72xbf16>, vector<72x512xbf16>, vector<8x512xf32> -> vector<8x512xf32>
    %123 = arith.addf %122, %48 : vector<8x512xf32>
    %cst_34 = arith.constant 0.000000e+00 : f32
    %124 = vector.broadcast %cst_34 : f32 to vector<8x512xf32>
    %125 = arith.maximumf %123, %124 : vector<8x512xf32>
    %c0_35 = arith.constant 0 : index
    %c0_36 = arith.constant 0 : index
    %126 = vector.load %arg11[%c0_35, %c0_36] : memref<16x8xbf16, #tpu.memory_space<vmem>>, vector<16x8xbf16>
    %127 = arith.truncf %125 : vector<8x512xf32> to vector<8x512xbf16>
    %cst_37 = arith.constant dense<0.000000e+00> : vector<16x512xf32>
    %128 = tpu.matmul %126, %127, %cst_37 {dimension_numbers = #tpu.dot_dimension_numbers<[1], [0], [0], [1], [0, 0, 1, 1], [], []>} : vector<16x8xbf16>, vector<8x512xbf16>, vector<16x512xf32> -> vector<16x512xf32>
    %c17_i32_38 = arith.constant 17 : i32
    %129 = tpu.dynamic_rotate %125 by %c17_i32_38 dim 1 : vector<8x512xf32>, i32 -> vector<8x512xf32>
    %130 = vector.extract_strided_slice %6 {offsets = [0, 0], sizes = [1, 512], strides = [1, 1]} : vector<9x512xf32> to vector<1x512xf32>
    %131 = vector.broadcast %130 : vector<1x512xf32> to vector<8x512xf32>
    %132 = arith.mulf %129, %131 : vector<8x512xf32>
    %c16_i32_39 = arith.constant 16 : i32
    %133 = tpu.dynamic_rotate %125 by %c16_i32_39 dim 1 : vector<8x512xf32>, i32 -> vector<8x512xf32>
    %134 = vector.extract_strided_slice %6 {offsets = [1, 0], sizes = [1, 512], strides = [1, 1]} : vector<9x512xf32> to vector<1x512xf32>
    %135 = vector.broadcast %134 : vector<1x512xf32> to vector<8x512xf32>
    %136 = arith.mulf %133, %135 : vector<8x512xf32>
    %c15_i32_40 = arith.constant 15 : i32
    %137 = tpu.dynamic_rotate %125 by %c15_i32_40 dim 1 : vector<8x512xf32>, i32 -> vector<8x512xf32>
    %138 = vector.extract_strided_slice %6 {offsets = [2, 0], sizes = [1, 512], strides = [1, 1]} : vector<9x512xf32> to vector<1x512xf32>
    %139 = vector.broadcast %138 : vector<1x512xf32> to vector<8x512xf32>
    %140 = arith.mulf %137, %139 : vector<8x512xf32>
    %c1_i32_41 = arith.constant 1 : i32
    %141 = tpu.dynamic_rotate %125 by %c1_i32_41 dim 1 : vector<8x512xf32>, i32 -> vector<8x512xf32>
    %142 = vector.extract_strided_slice %6 {offsets = [3, 0], sizes = [1, 512], strides = [1, 1]} : vector<9x512xf32> to vector<1x512xf32>
    %143 = vector.broadcast %142 : vector<1x512xf32> to vector<8x512xf32>
    %144 = arith.mulf %141, %143 : vector<8x512xf32>
    %c511_i32_42 = arith.constant 511 : i32
    %145 = tpu.dynamic_rotate %125 by %c511_i32_42 dim 1 : vector<8x512xf32>, i32 -> vector<8x512xf32>
    %146 = vector.extract_strided_slice %6 {offsets = [5, 0], sizes = [1, 512], strides = [1, 1]} : vector<9x512xf32> to vector<1x512xf32>
    %147 = vector.broadcast %146 : vector<1x512xf32> to vector<8x512xf32>
    %148 = arith.mulf %145, %147 : vector<8x512xf32>
    %c497_i32_43 = arith.constant 497 : i32
    %149 = tpu.dynamic_rotate %125 by %c497_i32_43 dim 1 : vector<8x512xf32>, i32 -> vector<8x512xf32>
    %150 = vector.extract_strided_slice %6 {offsets = [6, 0], sizes = [1, 512], strides = [1, 1]} : vector<9x512xf32> to vector<1x512xf32>
    %151 = vector.broadcast %150 : vector<1x512xf32> to vector<8x512xf32>
    %152 = arith.mulf %149, %151 : vector<8x512xf32>
    %c496_i32_44 = arith.constant 496 : i32
    %153 = tpu.dynamic_rotate %125 by %c496_i32_44 dim 1 : vector<8x512xf32>, i32 -> vector<8x512xf32>
    %154 = vector.extract_strided_slice %6 {offsets = [7, 0], sizes = [1, 512], strides = [1, 1]} : vector<9x512xf32> to vector<1x512xf32>
    %155 = vector.broadcast %154 : vector<1x512xf32> to vector<8x512xf32>
    %156 = arith.mulf %153, %155 : vector<8x512xf32>
    %c495_i32_45 = arith.constant 495 : i32
    %157 = tpu.dynamic_rotate %125 by %c495_i32_45 dim 1 : vector<8x512xf32>, i32 -> vector<8x512xf32>
    %158 = vector.extract_strided_slice %6 {offsets = [8, 0], sizes = [1, 512], strides = [1, 1]} : vector<9x512xf32> to vector<1x512xf32>
    %159 = vector.broadcast %158 : vector<1x512xf32> to vector<8x512xf32>
    %160 = arith.mulf %157, %159 : vector<8x512xf32>
    %161 = tpu.concatenate %132, %136, %140, %144, %125, %148, %152, %156, %160 in 0 : vector<8x512xf32>, vector<8x512xf32>, vector<8x512xf32>, vector<8x512xf32>, vector<8x512xf32>, vector<8x512xf32>, vector<8x512xf32>, vector<8x512xf32>, vector<8x512xf32> -> vector<72x512xf32>
    %162 = arith.truncf %161 : vector<72x512xf32> to vector<72x512xbf16>
    %c0_46 = arith.constant 0 : index
    %c0_47 = arith.constant 0 : index
    %163 = vector.load %arg9[%c0_46, %c0_47] : memref<16x72xbf16, #tpu.memory_space<vmem>>, vector<16x72xbf16>
    %cst_48 = arith.constant dense<0.000000e+00> : vector<16x512xf32>
    %164 = tpu.matmul %163, %162, %cst_48 {dimension_numbers = #tpu.dot_dimension_numbers<[1], [0], [0], [1], [0, 0, 1, 1], [], []>} : vector<16x72xbf16>, vector<72x512xbf16>, vector<16x512xf32> -> vector<16x512xf32>
    %165 = tpu.concatenate %128, %164 in 0 : vector<16x512xf32>, vector<16x512xf32> -> vector<32x512xf32>
    %166 = arith.truncf %165 : vector<32x512xf32> to vector<32x512xbf16>
    %c0_49 = arith.constant 0 : index
    %c0_50 = arith.constant 0 : index
    %167 = vector.load %arg3[%c0_49, %c0_50] : memref<256x64xbf16, #tpu.memory_space<vmem>>, vector<256x64xbf16>
    %168 = vector.extract_strided_slice %166 {offsets = [0, 0], sizes = [32, 256], strides = [1, 1]} : vector<32x512xbf16> to vector<32x256xbf16>
    %cst_51 = arith.constant dense<0.000000e+00> : vector<32x64xf32>
    %169 = tpu.matmul %168, %167, %cst_51 {dimension_numbers = #tpu.dot_dimension_numbers<[1], [0], [0], [1], [0, 0, 1, 1], [], []>} : vector<32x256xbf16>, vector<256x64xbf16>, vector<32x64xf32> -> vector<32x64xf32>
    %170 = vector.extract_strided_slice %166 {offsets = [0, 256], sizes = [32, 256], strides = [1, 1]} : vector<32x512xbf16> to vector<32x256xbf16>
    %cst_52 = arith.constant dense<0.000000e+00> : vector<32x64xf32>
    %171 = tpu.matmul %170, %167, %cst_52 {dimension_numbers = #tpu.dot_dimension_numbers<[1], [0], [0], [1], [0, 0, 1, 1], [], []>} : vector<32x256xbf16>, vector<256x64xbf16>, vector<32x64xf32> -> vector<32x64xf32>
    %172 = tpu.concatenate %169, %171 in 1 : vector<32x64xf32>, vector<32x64xf32> -> vector<32x128xf32>
    %173 = vector.extract_strided_slice %172 {offsets = [0, 0], sizes = [16, 128], strides = [1, 1]} : vector<32x128xf32> to vector<16x128xf32>
    %c0_53 = arith.constant 0 : index
    %c0_54 = arith.constant 0 : index
    %174 = vector.load %arg12[%c0_53, %c0_54] : memref<16x1xf32, #tpu.memory_space<vmem>>, vector<16x1xf32>
    %175 = vector.broadcast %174 : vector<16x1xf32> to vector<16x128xf32>
    %176 = arith.addf %173, %175 : vector<16x128xf32>
    %177 = vector.extract_strided_slice %172 {offsets = [16, 0], sizes = [16, 128], strides = [1, 1]} : vector<32x128xf32> to vector<16x128xf32>
    %cst_55 = arith.constant 0.000000e+00 : f32
    %178 = vector.broadcast %cst_55 : f32 to vector<16x128xf32>
    %179 = arith.maximumf %177, %178 : vector<16x128xf32>
    %c9_i32 = arith.constant 9 : i32
    %180 = tpu.dynamic_rotate %179 by %c9_i32 dim 1 : vector<16x128xf32>, i32 -> vector<16x128xf32>
    %181 = vector.extract_strided_slice %7 {offsets = [0, 0], sizes = [1, 128], strides = [1, 1]} : vector<9x128xf32> to vector<1x128xf32>
    %182 = vector.broadcast %181 : vector<1x128xf32> to vector<16x128xf32>
    %183 = arith.mulf %180, %182 : vector<16x128xf32>
    %c8_i32 = arith.constant 8 : i32
    %184 = tpu.dynamic_rotate %179 by %c8_i32 dim 1 : vector<16x128xf32>, i32 -> vector<16x128xf32>
    %185 = vector.extract_strided_slice %7 {offsets = [1, 0], sizes = [1, 128], strides = [1, 1]} : vector<9x128xf32> to vector<1x128xf32>
    %186 = vector.broadcast %185 : vector<1x128xf32> to vector<16x128xf32>
    %187 = arith.mulf %184, %186 : vector<16x128xf32>
    %c7_i32 = arith.constant 7 : i32
    %188 = tpu.dynamic_rotate %179 by %c7_i32 dim 1 : vector<16x128xf32>, i32 -> vector<16x128xf32>
    %189 = vector.extract_strided_slice %7 {offsets = [2, 0], sizes = [1, 128], strides = [1, 1]} : vector<9x128xf32> to vector<1x128xf32>
    %190 = vector.broadcast %189 : vector<1x128xf32> to vector<16x128xf32>
    %191 = arith.mulf %188, %190 : vector<16x128xf32>
    %c1_i32_56 = arith.constant 1 : i32
    %192 = tpu.dynamic_rotate %179 by %c1_i32_56 dim 1 : vector<16x128xf32>, i32 -> vector<16x128xf32>
    %193 = vector.extract_strided_slice %7 {offsets = [3, 0], sizes = [1, 128], strides = [1, 1]} : vector<9x128xf32> to vector<1x128xf32>
    %194 = vector.broadcast %193 : vector<1x128xf32> to vector<16x128xf32>
    %195 = arith.mulf %192, %194 : vector<16x128xf32>
    %c127_i32 = arith.constant 127 : i32
    %196 = tpu.dynamic_rotate %179 by %c127_i32 dim 1 : vector<16x128xf32>, i32 -> vector<16x128xf32>
    %197 = vector.extract_strided_slice %7 {offsets = [5, 0], sizes = [1, 128], strides = [1, 1]} : vector<9x128xf32> to vector<1x128xf32>
    %198 = vector.broadcast %197 : vector<1x128xf32> to vector<16x128xf32>
    %199 = arith.mulf %196, %198 : vector<16x128xf32>
    %c121_i32 = arith.constant 121 : i32
    %200 = tpu.dynamic_rotate %179 by %c121_i32 dim 1 : vector<16x128xf32>, i32 -> vector<16x128xf32>
    %201 = vector.extract_strided_slice %7 {offsets = [6, 0], sizes = [1, 128], strides = [1, 1]} : vector<9x128xf32> to vector<1x128xf32>
    %202 = vector.broadcast %201 : vector<1x128xf32> to vector<16x128xf32>
    %203 = arith.mulf %200, %202 : vector<16x128xf32>
    %c120_i32 = arith.constant 120 : i32
    %204 = tpu.dynamic_rotate %179 by %c120_i32 dim 1 : vector<16x128xf32>, i32 -> vector<16x128xf32>
    %205 = vector.extract_strided_slice %7 {offsets = [7, 0], sizes = [1, 128], strides = [1, 1]} : vector<9x128xf32> to vector<1x128xf32>
    %206 = vector.broadcast %205 : vector<1x128xf32> to vector<16x128xf32>
    %207 = arith.mulf %204, %206 : vector<16x128xf32>
    %c119_i32 = arith.constant 119 : i32
    %208 = tpu.dynamic_rotate %179 by %c119_i32 dim 1 : vector<16x128xf32>, i32 -> vector<16x128xf32>
    %209 = vector.extract_strided_slice %7 {offsets = [8, 0], sizes = [1, 128], strides = [1, 1]} : vector<9x128xf32> to vector<1x128xf32>
    %210 = vector.broadcast %209 : vector<1x128xf32> to vector<16x128xf32>
    %211 = arith.mulf %208, %210 : vector<16x128xf32>
    %212 = tpu.concatenate %183, %187, %191, %195, %179, %199, %203, %207, %211 in 0 : vector<16x128xf32>, vector<16x128xf32>, vector<16x128xf32>, vector<16x128xf32>, vector<16x128xf32>, vector<16x128xf32>, vector<16x128xf32>, vector<16x128xf32>, vector<16x128xf32> -> vector<144x128xf32>
    %213 = arith.truncf %212 : vector<144x128xf32> to vector<144x128xbf16>
    %c0_57 = arith.constant 0 : index
    %c0_58 = arith.constant 0 : index
    %214 = vector.load %arg10[%c0_57, %c0_58] : memref<16x144xbf16, #tpu.memory_space<vmem>>, vector<16x144xbf16>
    %cst_59 = arith.constant dense<0.000000e+00> : vector<16x128xf32>
    %215 = tpu.matmul %214, %213, %cst_59 {dimension_numbers = #tpu.dot_dimension_numbers<[1], [0], [0], [1], [0, 0, 1, 1], [], []>} : vector<16x144xbf16>, vector<144x128xbf16>, vector<16x128xf32> -> vector<16x128xf32>
    %216 = arith.addf %215, %176 : vector<16x128xf32>
    %cst_60 = arith.constant 0.000000e+00 : f32
    %217 = vector.broadcast %cst_60 : f32 to vector<16x128xf32>
    %218 = arith.maximumf %216, %217 : vector<16x128xf32>
    %c0_61 = arith.constant 0 : index
    %c0_62 = arith.constant 0 : index
    %219 = vector.load %arg4[%c0_61, %c0_62] : memref<2x128xf32, #tpu.memory_space<vmem>>, vector<2x128xf32>
    %cst_63 = arith.constant dense<0.000000e+00> : vector<2x16xf32>
    %220 = tpu.matmul %219, %218, %cst_63 {dimension_numbers = #tpu.dot_dimension_numbers<[1], [1], [0], [0], [0, 0, 1, 0], [], []>} : vector<2x128xf32>, vector<16x128xf32>, vector<2x16xf32> -> vector<2x16xf32>
    %c0_64 = arith.constant 0 : index
    %c0_65 = arith.constant 0 : index
    %221 = vector.load %arg13[%c0_64, %c0_65] : memref<16x10xf32, #tpu.memory_space<vmem>>, vector<16x10xf32>
    %cst_66 = arith.constant dense<0.000000e+00> : vector<2x10xf32>
    %222 = tpu.matmul %220, %221, %cst_66 {dimension_numbers = #tpu.dot_dimension_numbers<[1], [0], [0], [1], [0, 0, 1, 1], [], []>} : vector<2x16xf32>, vector<16x10xf32>, vector<2x10xf32> -> vector<2x10xf32>
    %c0_67 = arith.constant 0 : index
    %c0_68 = arith.constant 0 : index
    %223 = vector.load %arg14[%c0_67, %c0_68] : memref<1x10xf32, #tpu.memory_space<vmem>>, vector<1x10xf32>
    %224 = vector.broadcast %223 : vector<1x10xf32> to vector<2x10xf32>
    %225 = arith.addf %222, %224 : vector<2x10xf32>
    %c0_69 = arith.constant 0 : index
    %c0_70 = arith.constant 0 : index
    %226 = vector.load %arg15[%c0_69, %c0_70] : memref<2x10xf32, #tpu.memory_space<vmem>>, vector<2x10xf32>
    tpu.vector_store %arg15[%c0_69, %c0_70], %225 {strides = array<i32>} : memref<2x10xf32, #tpu.memory_space<vmem>>, vector<2x10xf32>,
    return
  }
}

</mosaic_0001>

<llo_original>
// kernel: resnet_forward.1
$region0: #{resnet_forward.1}
  #allocation0 [shape = 'u32[]', space=smem, size = 0x4, offset = 0x4, fixed_abs, tag = 'smem constant byte address 0x4 - core index']
  #allocation1 [shape = 'u32[144,128]{1,0:T(1,128)}', space=vmem, size = 0x12000, scoped, tag = 'internal scratch']
  %s0 = inlined_call_operand.vmem [shape: f32[8,256], index: 0, kind: input, shape index: {}]
  %s1 = inlined_call_operand.vmem [shape: f32[9,512], index: 1, kind: input, shape index: {}]
  %s2 = inlined_call_operand.vmem [shape: f32[9,128], index: 2, kind: input, shape index: {}]
  %s3 = inlined_call_operand.vmem [shape: bf16[256,64], index: 3, kind: input, shape index: {}]
  %s4 = inlined_call_operand.vmem [shape: f32[2,128], index: 4, kind: input, shape index: {}]
  %s5 = inlined_call_operand.vmem [shape: bf16[8,72], index: 5, kind: input, shape index: {}]
  %s6 = inlined_call_operand.vmem [shape: f32[8,1], index: 6, kind: input, shape index: {}]
  %s7 = inlined_call_operand.vmem [shape: bf16[8,72], index: 7, kind: input, shape index: {}]
  %s8 = inlined_call_operand.vmem [shape: bf16[8,72], index: 8, kind: input, shape index: {}]
  %s9 = inlined_call_operand.vmem [shape: bf16[16,72], index: 9, kind: input, shape index: {}]
  %s10 = inlined_call_operand.vmem [shape: bf16[16,144], index: 10, kind: input, shape index: {}]
  %s11 = inlined_call_operand.vmem [shape: bf16[16,8], index: 11, kind: input, shape index: {}]
  %s12 = inlined_call_operand.vmem [shape: f32[16,1], index: 12, kind: input, shape index: {}]
  %s13 = inlined_call_operand.vmem [shape: f32[16,10], index: 13, kind: input, shape index: {}]
  %s14 = inlined_call_operand.vmem [shape: f32[1,10], index: 14, kind: input, shape index: {}]
  %s15 = inlined_call_operand.hbm [shape: f32[2,10], index: 15, kind: output, shape index: {}]
  %s16 = sld [smem:[#allocation0]]
  $region70: #{resnet_forward.1} parent=0
    _
  %s18 = ssub.s32 1, %s16
  %s19 = scalar_select 0, %s18, %s16
  $region1: #{resnet_forward.1} parent=0
    #allocation2 [shape = 'u8[1024]{0}', space=vmem, size = 0x400, scoped, tag = 'output window, operand 0, single buffered']
    #allocation3 [shape = 's32[1]{0}', space=sflag, size = 0x4, scoped, tag = 'scoped memory for resnet_forward.1']
    %20 = vsyncpa [#allocation3], 0
    // Predicated region
    $region2: #{resnet_forward.1} parent=1 // pred_check
      _
    $region3: #{resnet_forward.1} parent=1 // pred_check_branch
      %22 = sbr.rel (0) target = $region5
    $region4: #{resnet_forward.1} parent=1 // pred_region
      _
    $region5: #{resnet_forward.1} parent=1 // pred_fallthru
      _
    // Predicated region
    $region6: #{resnet_forward.1} parent=1 // pred_check
      _
    $region7: #{resnet_forward.1} parent=1 // pred_check_branch
      %24 = sbr.rel (0) target = $region9
    $region8: #{resnet_forward.1} parent=1 // pred_region
      _
    $region9: #{resnet_forward.1} parent=1 // pred_fallthru
      _
    // Predicated region
    $region10: #{resnet_forward.1} parent=1 // pred_check
      _
    $region11: #{resnet_forward.1} parent=1 // pred_check_branch
      %26 = sbr.rel (0) target = $region13
    $region12: #{resnet_forward.1} parent=1 // pred_region
      _
    $region13: #{resnet_forward.1} parent=1 // pred_fallthru
      _
    // Predicated region
    $region14: #{resnet_forward.1} parent=1 // pred_check
      _
    $region15: #{resnet_forward.1} parent=1 // pred_check_branch
      %28 = sbr.rel (0) target = $region17
    $region16: #{resnet_forward.1} parent=1 // pred_region
      _
    $region17: #{resnet_forward.1} parent=1 // pred_fallthru
      _
    // Predicated region
    $region18: #{resnet_forward.1} parent=1 // pred_check
      _
    $region19: #{resnet_forward.1} parent=1 // pred_check_branch
      %30 = sbr.rel (0) target = $region21
    $region20: #{resnet_forward.1} parent=1 // pred_region
      _
    $region21: #{resnet_forward.1} parent=1 // pred_fallthru
      _
    // Predicated region
    $region22: #{resnet_forward.1} parent=1 // pred_check
      _
    $region23: #{resnet_forward.1} parent=1 // pred_check_branch
      %32 = sbr.rel (0) target = $region25
    $region24: #{resnet_forward.1} parent=1 // pred_region
      _
    $region25: #{resnet_forward.1} parent=1 // pred_fallthru
      _
    // Predicated region
    $region26: #{resnet_forward.1} parent=1 // pred_check
      _
    $region27: #{resnet_forward.1} parent=1 // pred_check_branch
      %34 = sbr.rel (0) target = $region29
    $region28: #{resnet_forward.1} parent=1 // pred_region
      _
    $region29: #{resnet_forward.1} parent=1 // pred_fallthru
      _
    // Predicated region
    $region30: #{resnet_forward.1} parent=1 // pred_check
      _
    $region31: #{resnet_forward.1} parent=1 // pred_check_branch
      %36 = sbr.rel (0) target = $region33
    $region32: #{resnet_forward.1} parent=1 // pred_region
      _
    $region33: #{resnet_forward.1} parent=1 // pred_fallthru
      _
    // Predicated region
    $region34: #{resnet_forward.1} parent=1 // pred_check
      _
    $region35: #{resnet_forward.1} parent=1 // pred_check_branch
      %38 = sbr.rel (0) target = $region37
    $region36: #{resnet_forward.1} parent=1 // pred_region
      _
    $region37: #{resnet_forward.1} parent=1 // pred_fallthru
      _
    // Predicated region
    $region38: #{resnet_forward.1} parent=1 // pred_check
      _
    $region39: #{resnet_forward.1} parent=1 // pred_check_branch
      %40 = sbr.rel (0) target = $region41
    $region40: #{resnet_forward.1} parent=1 // pred_region
      _
    $region41: #{resnet_forward.1} parent=1 // pred_fallthru
      _
    // Predicated region
    $region42: #{resnet_forward.1} parent=1 // pred_check
      _
    $region43: #{resnet_forward.1} parent=1 // pred_check_branch
      %42 = sbr.rel (0) target = $region45
    $region44: #{resnet_forward.1} parent=1 // pred_region
      _
    $region45: #{resnet_forward.1} parent=1 // pred_fallthru
      _
    // Predicated region
    $region46: #{resnet_forward.1} parent=1 // pred_check
      _
    $region47: #{resnet_forward.1} parent=1 // pred_check_branch
      %44 = sbr.rel (0) target = $region49
    $region48: #{resnet_forward.1} parent=1 // pred_region
      _
    $region49: #{resnet_forward.1} parent=1 // pred_fallthru
      _
    // Predicated region
    $region50: #{resnet_forward.1} parent=1 // pred_check
      _
    $region51: #{resnet_forward.1} parent=1 // pred_check_branch
      %46 = sbr.rel (0) target = $region53
    $region52: #{resnet_forward.1} parent=1 // pred_region
      _
    $region53: #{resnet_forward.1} parent=1 // pred_fallthru
      _
    // Predicated region
    $region54: #{resnet_forward.1} parent=1 // pred_check
      _
    $region55: #{resnet_forward.1} parent=1 // pred_check_branch
      %48 = sbr.rel (0) target = $region57
    $region56: #{resnet_forward.1} parent=1 // pred_region
      _
    $region57: #{resnet_forward.1} parent=1 // pred_fallthru
      _
    // Predicated region
    $region58: #{resnet_forward.1} parent=1 // pred_check
      _
    $region59: #{resnet_forward.1} parent=1 // pred_check_branch
      %50 = sbr.rel (0) target = $region61
    $region60: #{resnet_forward.1} parent=1 // pred_region
      _
    $region61: #{resnet_forward.1} parent=1 // pred_fallthru
      _
    %v52 = vld [vmem:[%s0] sm:$0xff]
    %v53 = vld [vmem:[%s0 + $0x8] sm:$0xff]
    %v56 = vrot.slane %v52, 4
    %v57 = vrot.slane %v53, 4
    %vm60 = vcmask 1043456
    %v61 = vsel %vm60, %v52, 0.0
    %v62 = vsel %vm60, %v53, 0.0
    %v63 = vsel %vm60, %v56, 0.0
    %v64 = vsel %vm60, %v57, 0.0
    %v65 = vld [vmem:[%s1] sm:$0xff]
    %v66 = vld [vmem:[%s1 + $0x8] sm:$0xff]
    %v67 = vld [vmem:[%s1 + $0x10] sm:$0xff]
    %v68 = vld [vmem:[%s1 + $0x18] sm:$0xff]
    %v69 = vld [vmem:[%s1 + $0x20] sm:$0x1]
    %v70 = vld [vmem:[%s1 + $0x28] sm:$0x1]
    %v71 = vld [vmem:[%s1 + $0x30] sm:$0x1]
    %v72 = vld [vmem:[%s1 + $0x38] sm:$0x1]
    %v73 = vld [vmem:[%s2] sm:$0xff]
    %v74 = vld [vmem:[%s2 + $0x8] sm:$0x1]
    %75 = vrot.lane.b32.xlu0 %v61, 17
    %v76 = vpop.permute.xlu0 %75
    %77 = vrot.lane.b32.xlu0 %v62, 17
    %v78 = vpop.permute.xlu0 %77
    %79 = vrot.lane.b32.xlu0 %v63, 17
    %v80 = vpop.permute.xlu0 %79
    %81 = vrot.lane.b32.xlu0 %v64, 17
    %v82 = vpop.permute.xlu0 %81
    %v83 = vlaneseq
    %v84 = vand.u32 %v83, 127
    %vm85 = vcmp.lt.s32.totalorder %v84, 17
    %v86 = vsel %vm85, %v80, %v82
    %v87 = vsel %vm85, %v78, %v80
    %v88 = vsel %vm85, %v76, %v78
    %v89 = vsel %vm85, %v82, %v76
    %v90 = vlaneseq
    %v91 = vshrl.u32 %v90, 7
    %v92 = vsub.s32 0, %v91
    %v93 = vrot.slane %v65, %v92
    %v94 = vlaneseq
    %v95 = vshrl.u32 %v94, 7
    %v96 = vsub.s32 0, %v95
    %v97 = vrot.slane %v66, %v96
    %v98 = vlaneseq
    %v99 = vshrl.u32 %v98, 7
    %v100 = vsub.s32 0, %v99
    %v101 = vrot.slane %v67, %v100
    %v102 = vlaneseq
    %v103 = vshrl.u32 %v102, 7
    %v104 = vsub.s32 0, %v103
    %v105 = vrot.slane %v68, %v104
    %v106 = vmul.f32 %v89, %v93
    %v107 = vmul.f32 %v88, %v97
    %v108 = vmul.f32 %v87, %v101
    %v109 = vmul.f32 %v86, %v105
    %110 = vrot.lane.b32.xlu0 %v61, 16
    %v111 = vpop.permute.xlu0 %110
    %112 = vrot.lane.b32.xlu0 %v62, 16
    %v113 = vpop.permute.xlu0 %112
    %114 = vrot.lane.b32.xlu0 %v63, 16
    %v115 = vpop.permute.xlu0 %114
    %116 = vrot.lane.b32.xlu0 %v64, 16
    %v117 = vpop.permute.xlu0 %116
    %vm118 = vcmp.lt.s32.totalorder %v84, 16
    %v119 = vsel %vm118, %v115, %v117
    %v120 = vsel %vm118, %v113, %v115
    %v121 = vsel %vm118, %v111, %v113
    %v122 = vsel %vm118, %v117, %v111
    %v123 = vlaneseq
    %v124 = vshrl.u32 %v123, 7
    %v125 = vsub.s32 1, %v124
    %v126 = vrot.slane %v65, %v125
    %v127 = vlaneseq
    %v128 = vshrl.u32 %v127, 7
    %v129 = vsub.s32 1, %v128
    %v130 = vrot.slane %v66, %v129
    %v131 = vlaneseq
    %v132 = vshrl.u32 %v131, 7
    %v133 = vsub.s32 1, %v132
    %v134 = vrot.slane %v67, %v133
    %v135 = vlaneseq
    %v136 = vshrl.u32 %v135, 7
    %v137 = vsub.s32 1, %v136
    %v138 = vrot.slane %v68, %v137
    %v139 = vmul.f32 %v122, %v126
    %v140 = vmul.f32 %v121, %v130
    %v141 = vmul.f32 %v120, %v134
    %v142 = vmul.f32 %v119, %v138
    %143 = vrot.lane.b32.xlu0 %v61, 15
    %v144 = vpop.permute.xlu0 %143
    %145 = vrot.lane.b32.xlu0 %v62, 15
    %v146 = vpop.permute.xlu0 %145
    %147 = vrot.lane.b32.xlu0 %v63, 15
    %v148 = vpop.permute.xlu0 %147
    %149 = vrot.lane.b32.xlu0 %v64, 15
    %v150 = vpop.permute.xlu0 %149
    %vm151 = vcmp.lt.s32.totalorder %v84, 15
    %v152 = vsel %vm151, %v148, %v150
    %v153 = vsel %vm151, %v146, %v148
    %v154 = vsel %vm151, %v144, %v146
    %v155 = vsel %vm151, %v150, %v144
    %v156 = vlaneseq
    %v157 = vshrl.u32 %v156, 7
    %v158 = vsub.s32 2, %v157
    %v159 = vrot.slane %v65, %v158
    %v160 = vlaneseq
    %v161 = vshrl.u32 %v160, 7
    %v162 = vsub.s32 2, %v161
    %v163 = vrot.slane %v66, %v162
    %v164 = vlaneseq
    %v165 = vshrl.u32 %v164, 7
    %v166 = vsub.s32 2, %v165
    %v167 = vrot.slane %v67, %v166
    %v168 = vlaneseq
    %v169 = vshrl.u32 %v168, 7
    %v170 = vsub.s32 2, %v169
    %v171 = vrot.slane %v68, %v170
    %v172 = vmul.f32 %v155, %v159
    %v173 = vmul.f32 %v154, %v163
    %v174 = vmul.f32 %v153, %v167
    %v175 = vmul.f32 %v152, %v171
    %176 = vrot.lane.b32.xlu0 %v61, 1
    %v177 = vpop.permute.xlu0 %176
    %178 = vrot.lane.b32.xlu0 %v62, 1
    %v179 = vpop.permute.xlu0 %178
    %180 = vrot.lane.b32.xlu0 %v63, 1
    %v181 = vpop.permute.xlu0 %180
    %182 = vrot.lane.b32.xlu0 %v64, 1
    %v183 = vpop.permute.xlu0 %182
    %vm184 = vcmp.lt.s32.totalorder %v84, 1
    %v185 = vsel %vm184, %v181, %v183
    %v186 = vsel %vm184, %v179, %v181
    %v187 = vsel %vm184, %v177, %v179
    %v188 = vsel %vm184, %v183, %v177
    %v189 = vlaneseq
    %v190 = vshrl.u32 %v189, 7
    %v191 = vsub.s32 3, %v190
    %v192 = vrot.slane %v65, %v191
    %v193 = vlaneseq
    %v194 = vshrl.u32 %v193, 7
    %v195 = vsub.s32 3, %v194
    %v196 = vrot.slane %v66, %v195
    %v197 = vlaneseq
    %v198 = vshrl.u32 %v197, 7
    %v199 = vsub.s32 3, %v198
    %v200 = vrot.slane %v67, %v199
    %v201 = vlaneseq
    %v202 = vshrl.u32 %v201, 7
    %v203 = vsub.s32 3, %v202
    %v204 = vrot.slane %v68, %v203
    %v205 = vmul.f32 %v188, %v192
    %v206 = vmul.f32 %v187, %v196
    %v207 = vmul.f32 %v186, %v200
    %v208 = vmul.f32 %v185, %v204
    %209 = vrot.lane.b32.xlu0 %v61, 127
    %v210 = vpop.permute.xlu0 %209
    %211 = vrot.lane.b32.xlu0 %v62, 127
    %v212 = vpop.permute.xlu0 %211
    %213 = vrot.lane.b32.xlu0 %v63, 127
    %v214 = vpop.permute.xlu0 %213
    %215 = vrot.lane.b32.xlu0 %v64, 127
    %v216 = vpop.permute.xlu0 %215
    %vm217 = vcmp.lt.s32.totalorder %v84, 127
    %v218 = vsel %vm217, %v214, %v216
    %v219 = vsel %vm217, %v212, %v214
    %v220 = vsel %vm217, %v210, %v212
    %v221 = vsel %vm217, %v216, %v210
    %v222 = vlaneseq
    %v223 = vshrl.u32 %v222, 7
    %v224 = vsub.s32 5, %v223
    %v225 = vrot.slane %v65, %v224
    %v226 = vlaneseq
    %v227 = vshrl.u32 %v226, 7
    %v228 = vsub.s32 5, %v227
    %v229 = vrot.slane %v66, %v228
    %v230 = vlaneseq
    %v231 = vshrl.u32 %v230, 7
    %v232 = vsub.s32 5, %v231
    %v233 = vrot.slane %v67, %v232
    %v234 = vlaneseq
    %v235 = vshrl.u32 %v234, 7
    %v236 = vsub.s32 5, %v235
    %v237 = vrot.slane %v68, %v236
    %v238 = vmul.f32 %v220, %v225
    %v239 = vmul.f32 %v219, %v229
    %v240 = vmul.f32 %v218, %v233
    %v241 = vmul.f32 %v221, %v237
    %242 = vrot.lane.b32.xlu0 %v61, 113
    %v243 = vpop.permute.xlu0 %242
    %244 = vrot.lane.b32.xlu0 %v62, 113
    %v245 = vpop.permute.xlu0 %244
    %246 = vrot.lane.b32.xlu0 %v63, 113
    %v247 = vpop.permute.xlu0 %246
    %248 = vrot.lane.b32.xlu0 %v64, 113
    %v249 = vpop.permute.xlu0 %248
    %vm250 = vcmp.lt.s32.totalorder %v84, 113
    %v251 = vsel %vm250, %v247, %v249
    %v252 = vsel %vm250, %v245, %v247
    %v253 = vsel %vm250, %v243, %v245
    %v254 = vsel %vm250, %v249, %v243
    %v255 = vlaneseq
    %v256 = vshrl.u32 %v255, 7
    %v257 = vsub.s32 6, %v256
    %v258 = vrot.slane %v65, %v257
    %v259 = vlaneseq
    %v260 = vshrl.u32 %v259, 7
    %v261 = vsub.s32 6, %v260
    %v262 = vrot.slane %v66, %v261
    %v263 = vlaneseq
    %v264 = vshrl.u32 %v263, 7
    %v265 = vsub.s32 6, %v264
    %v266 = vrot.slane %v67, %v265
    %v267 = vlaneseq
    %v268 = vshrl.u32 %v267, 7
    %v269 = vsub.s32 6, %v268
    %v270 = vrot.slane %v68, %v269
    %v271 = vmul.f32 %v253, %v258
    %v272 = vmul.f32 %v252, %v262
    %v273 = vmul.f32 %v251, %v266
    %v274 = vmul.f32 %v254, %v270
    %275 = vrot.lane.b32.xlu0 %v61, 112
    %v276 = vpop.permute.xlu0 %275
    %277 = vrot.lane.b32.xlu0 %v62, 112
    %v278 = vpop.permute.xlu0 %277
    %279 = vrot.lane.b32.xlu0 %v63, 112
    %v280 = vpop.permute.xlu0 %279
    %281 = vrot.lane.b32.xlu0 %v64, 112
    %v282 = vpop.permute.xlu0 %281
    %vm283 = vcmp.lt.s32.totalorder %v84, 112
    %v284 = vsel %vm283, %v280, %v282
    %v285 = vsel %vm283, %v278, %v280
    %v286 = vsel %vm283, %v276, %v278
    %v287 = vsel %vm283, %v282, %v276
    %v288 = vlaneseq
    %v289 = vshrl.u32 %v288, 7
    %v290 = vsub.s32 7, %v289
    %v291 = vrot.slane %v65, %v290
    %v292 = vlaneseq
    %v293 = vshrl.u32 %v292, 7
    %v294 = vsub.s32 7, %v293
    %v295 = vrot.slane %v66, %v294
    %v296 = vlaneseq
    %v297 = vshrl.u32 %v296, 7
    %v298 = vsub.s32 7, %v297
    %v299 = vrot.slane %v67, %v298
    %v300 = vlaneseq
    %v301 = vshrl.u32 %v300, 7
    %v302 = vsub.s32 7, %v301
    %v303 = vrot.slane %v68, %v302
    %v304 = vmul.f32 %v286, %v291
    %v305 = vmul.f32 %v285, %v295
    %v306 = vmul.f32 %v284, %v299
    %v307 = vmul.f32 %v287, %v303
    %308 = vrot.lane.b32.xlu0 %v61, 111
    %v309 = vpop.permute.xlu0 %308
    %310 = vrot.lane.b32.xlu0 %v62, 111
    %v311 = vpop.permute.xlu0 %310
    %312 = vrot.lane.b32.xlu0 %v63, 111
    %v313 = vpop.permute.xlu0 %312
    %314 = vrot.lane.b32.xlu0 %v64, 111
    %v315 = vpop.permute.xlu0 %314
    %vm316 = vcmp.lt.s32.totalorder %v84, 111
    %v317 = vsel %vm316, %v313, %v315
    %v318 = vsel %vm316, %v311, %v313
    %v319 = vsel %vm316, %v309, %v311
    %v320 = vsel %vm316, %v315, %v309
    %v321 = vlaneseq
    %v322 = vshrl.u32 %v321, 7
    %v323 = vsub.s32 0, %v322
    %v324 = vrot.slane %v69, %v323
    %v325 = vlaneseq
    %v326 = vshrl.u32 %v325, 7
    %v327 = vsub.s32 0, %v326
    %v328 = vrot.slane %v70, %v327
    %v329 = vlaneseq
    %v330 = vshrl.u32 %v329, 7
    %v331 = vsub.s32 0, %v330
    %v332 = vrot.slane %v71, %v331
    %v333 = vlaneseq
    %v334 = vshrl.u32 %v333, 7
    %v335 = vsub.s32 0, %v334
    %v336 = vrot.slane %v72, %v335
    %v337 = vmul.f32 %v319, %v324
    %v338 = vmul.f32 %v318, %v328
    %v339 = vmul.f32 %v317, %v332
    %v340 = vmul.f32 %v320, %v336
    %v341 = vpack.c.bf16 %v139, %v106
    %v342 = vpack.c.bf16 %v140, %v107
    %v343 = vpack.c.bf16 %v141, %v108
    %v344 = vpack.c.bf16 %v142, %v109
    %v345 = vpack.c.bf16 %v205, %v172
    %v346 = vpack.c.bf16 %v206, %v173
    %v347 = vpack.c.bf16 %v207, %v174
    %v348 = vpack.c.bf16 %v208, %v175
    %v349 = vpack.c.bf16 %v238, %v61
    %v350 = vpack.c.bf16 %v239, %v62
    %v351 = vpack.c.bf16 %v240, %v63
    %v352 = vpack.c.bf16 %v241, %v64
    %v353 = vpack.c.bf16 %v304, %v271
    %v354 = vpack.c.bf16 %v305, %v272
    %v355 = vpack.c.bf16 %v306, %v273
    %v356 = vpack.c.bf16 %v307, %v274
    %v357 = vpack.c.bf16 %v337, %v337
    %v358 = vpack.c.bf16 %v338, %v338
    %v359 = vpack.c.bf16 %v339, %v339
    %v360 = vpack.c.bf16 %v340, %v340
    %v361 = vld [vmem:[%s5] sm:$0xf]
    %v362 = vld [vmem:[%s6] sm:$0xff]
    %364 = vset.pattern.permute.xlu0 0
    %365 = vperm.xlu0 %364, %v362
    %v366 = vpop.permute.xlu0 %365
    %vm368 = vcmask 588800
    %v370 = vsel %vm368, %v361, 0
    %v373 = vsel %vm60, %v357, 0
    %v376 = vsel %vm60, %v358, 0
    %v379 = vsel %vm60, %v359, 0
    %v382 = vsel %vm60, %v360, 0
    %384 = vmatprep.subr.bf16.mxu0 %v342
    %385 = vmatpush1.bf16.msra.mxu0 %v341
    %386 = vmatprep.subr.bf16.mxu0 %v346
    %387 = vmatpush1.bf16.msra.mxu0 %v345
    %388 = vmatprep.subr.bf16.mxu0 %v350
    %389 = vmatpush1.bf16.msra.mxu0 %v349
    %390 = vmatprep.subr.bf16.mxu0 %v354
    %391 = vmatpush1.bf16.msra.mxu0 %v353
    %392 = vmatprep.subr.bf16.mxu0 %v376
    %393 = vmatpush1.bf16.msra.mxu0 %v373
    %394 = vmatprep.subr.bf16.mxu0 0
    %395 = vmatpush1.bf16.msra.mxu0 0
    %396 = vmatprep.subr.bf16.mxu0 0
    %397 = vmatpush1.bf16.msra.mxu0 0
    %398 = vmatprep.subr.bf16.mxu0 0
    %399 = vmatpush1.bf16.msra.mxu0 0
    %400 = vmatprep.subr.bf16.mxu0 0
    %401 = vmatpush1.bf16.msra.mxu0 0
    %402 = vmatprep.subr.bf16.mxu0 0
    %403 = vmatpush1.bf16.msra.mxu0 0
    %404 = vmatprep.subr.bf16.mxu0 0
    %405 = vmatpush1.bf16.msra.mxu0 0
    %406 = vmatprep.subr.bf16.mxu0 0
    %407 = vmatpush1.bf16.msra.mxu0 0
    %408 = vmatprep.subr.bf16.mxu0 0
    %409 = vmatpush1.bf16.msra.mxu0 0
    %410 = vmatprep.subr.bf16.mxu0 0
    %411 = vmatpush1.bf16.msra.mxu0 0
    %412 = vmatprep.subr.bf16.mxu0 0
    %413 = vmatpush1.bf16.msra.mxu0 0
    %414 = vmatprep.subr.bf16.mxu0 0
    %415 = vmatpush1.bf16.msra.mxu0 0
    %416 = vmatprep.mubr.bf16.mxu0 0
    %417 = vmatmul.mubr.bf16.gmra.mrb[0].mxu0 %v370
    %v418 = vpop.f32.mrb[0].mxu0
    %v419 = vadd.f32 %v366, %v418
    %v420 = vpop.f32.mrb[0].mxu0
    %v421 = vadd.f32 %v366, %v420
    %v422 = vpop.f32.mrb[0].mxu0
    %v423 = vpop.f32.mrb[0].mxu0
    %424 = vdwg.mxu0
    %425 = vmatprep.subr.bf16.mxu0 %v344
    %426 = vmatpush1.bf16.msra.mxu0 %v343
    %427 = vmatprep.subr.bf16.mxu0 %v348
    %428 = vmatpush1.bf16.msra.mxu0 %v347
    %429 = vmatprep.subr.bf16.mxu0 %v352
    %430 = vmatpush1.bf16.msra.mxu0 %v351
    %431 = vmatprep.subr.bf16.mxu0 %v356
    %432 = vmatpush1.bf16.msra.mxu0 %v355
    %433 = vmatprep.subr.bf16.mxu0 %v382
    %434 = vmatpush1.bf16.msra.mxu0 %v379
    %435 = vmatprep.subr.bf16.mxu0 0
    %436 = vmatpush1.bf16.msra.mxu0 0
    %437 = vmatprep.subr.bf16.mxu0 0
    %438 = vmatpush1.bf16.msra.mxu0 0
    %439 = vmatprep.subr.bf16.mxu0 0
    %440 = vmatpush1.bf16.msra.mxu0 0
    %441 = vmatprep.subr.bf16.mxu0 0
    %442 = vmatpush1.bf16.msra.mxu0 0
    %443 = vmatprep.subr.bf16.mxu0 0
    %444 = vmatpush1.bf16.msra.mxu0 0
    %445 = vmatprep.subr.bf16.mxu0 0
    %446 = vmatpush1.bf16.msra.mxu0 0
    %447 = vmatprep.subr.bf16.mxu0 0
    %448 = vmatpush1.bf16.msra.mxu0 0
    %449 = vmatprep.subr.bf16.mxu0 0
    %450 = vmatpush1.bf16.msra.mxu0 0
    %451 = vmatprep.subr.bf16.mxu0 0
    %452 = vmatpush1.bf16.msra.mxu0 0
    %453 = vmatprep.subr.bf16.mxu0 0
    %454 = vmatpush1.bf16.msra.mxu0 0
    %455 = vmatprep.subr.bf16.mxu0 0
    %456 = vmatpush1.bf16.msra.mxu0 0
    %457 = vmatprep.mubr.bf16.mxu0 0
    %458 = vmatmul.mubr.bf16.gmra.mrb[0].mxu0 %v370
    %v459 = vpop.f32.mrb[0].mxu0
    %v460 = vadd.f32 %v366, %v459
    %v461 = vpop.f32.mrb[0].mxu0
    %v462 = vadd.f32 %v366, %v461
    %v463 = vpop.f32.mrb[0].mxu0
    %v464 = vpop.f32.mrb[0].mxu0
    %465 = vdwg.mxu0
    %v466 = vmax.f32 %v419, 0.0
    %v467 = vmax.f32 %v421, 0.0
    %v468 = vmax.f32 %v460, 0.0
    %v469 = vmax.f32 %v462, 0.0
    %470 = vrot.lane.b32.xlu0 %v466, 17
    %v471 = vpop.permute.xlu0 %470
    %472 = vrot.lane.b32.xlu0 %v467, 17
    %v473 = vpop.permute.xlu0 %472
    %474 = vrot.lane.b32.xlu0 %v468, 17
    %v475 = vpop.permute.xlu0 %474
    %476 = vrot.lane.b32.xlu0 %v469, 17
    %v477 = vpop.permute.xlu0 %476
    %v478 = vsel %vm85, %v475, %v477
    %v479 = vsel %vm85, %v473, %v475
    %v480 = vsel %vm85, %v471, %v473
    %v481 = vsel %vm85, %v477, %v471
    %v482 = vmul.f32 %v481, %v93
    %v483 = vmul.f32 %v480, %v97
    %v484 = vmul.f32 %v479, %v101
    %v485 = vmul.f32 %v478, %v105
    %486 = vrot.lane.b32.xlu0 %v466, 16
    %v487 = vpop.permute.xlu0 %486
    %488 = vrot.lane.b32.xlu0 %v467, 16
    %v489 = vpop.permute.xlu0 %488
    %490 = vrot.lane.b32.xlu0 %v468, 16
    %v491 = vpop.permute.xlu0 %490
    %492 = vrot.lane.b32.xlu0 %v469, 16
    %v493 = vpop.permute.xlu0 %492
    %v494 = vsel %vm118, %v491, %v493
    %v495 = vsel %vm118, %v489, %v491
    %v496 = vsel %vm118, %v487, %v489
    %v497 = vsel %vm118, %v493, %v487
    %v498 = vmul.f32 %v497, %v126
    %v499 = vmul.f32 %v496, %v130
    %v500 = vmul.f32 %v495, %v134
    %v501 = vmul.f32 %v494, %v138
    %502 = vrot.lane.b32.xlu0 %v466, 15
    %v503 = vpop.permute.xlu0 %502
    %504 = vrot.lane.b32.xlu0 %v467, 15
    %v505 = vpop.permute.xlu0 %504
    %506 = vrot.lane.b32.xlu0 %v468, 15
    %v507 = vpop.permute.xlu0 %506
    %508 = vrot.lane.b32.xlu0 %v469, 15
    %v509 = vpop.permute.xlu0 %508
    %v510 = vsel %vm151, %v507, %v509
    %v511 = vsel %vm151, %v505, %v507
    %v512 = vsel %vm151, %v503, %v505
    %v513 = vsel %vm151, %v509, %v503
    %v514 = vmul.f32 %v513, %v159
    %v515 = vmul.f32 %v512, %v163
    %v516 = vmul.f32 %v511, %v167
    %v517 = vmul.f32 %v510, %v171
    %518 = vrot.lane.b32.xlu0 %v466, 1
    %v519 = vpop.permute.xlu0 %518
    %520 = vrot.lane.b32.xlu0 %v467, 1
    %v521 = vpop.permute.xlu0 %520
    %522 = vrot.lane.b32.xlu0 %v468, 1
    %v523 = vpop.permute.xlu0 %522
    %524 = vrot.lane.b32.xlu0 %v469, 1
    %v525 = vpop.permute.xlu0 %524
    %v526 = vsel %vm184, %v523, %v525
    %v527 = vsel %vm184, %v521, %v523
    %v528 = vsel %vm184, %v519, %v521
    %v529 = vsel %vm184, %v525, %v519
    %v530 = vmul.f32 %v529, %v192
    %v531 = vmul.f32 %v528, %v196
    %v532 = vmul.f32 %v527, %v200
    %v533 = vmul.f32 %v526, %v204
    %534 = vrot.lane.b32.xlu0 %v466, 127
    %v535 = vpop.permute.xlu0 %534
    %536 = vrot.lane.b32.xlu0 %v467, 127
    %v537 = vpop.permute.xlu0 %536
    %538 = vrot.lane.b32.xlu0 %v468, 127
    %v539 = vpop.permute.xlu0 %538
    %540 = vrot.lane.b32.xlu0 %v469, 127
    %v541 = vpop.permute.xlu0 %540
    %v542 = vsel %vm217, %v539, %v541
    %v543 = vsel %vm217, %v537, %v539
    %v544 = vsel %vm217, %v535, %v537
    %v545 = vsel %vm217, %v541, %v535
    %v546 = vmul.f32 %v544, %v225
    %v547 = vmul.f32 %v543, %v229
    %v548 = vmul.f32 %v542, %v233
    %v549 = vmul.f32 %v545, %v237
    %550 = vrot.lane.b32.xlu0 %v466, 113
    %v551 = vpop.permute.xlu0 %550
    %552 = vrot.lane.b32.xlu0 %v467, 113
    %v553 = vpop.permute.xlu0 %552
    %554 = vrot.lane.b32.xlu0 %v468, 113
    %v555 = vpop.permute.xlu0 %554
    %556 = vrot.lane.b32.xlu0 %v469, 113
    %v557 = vpop.permute.xlu0 %556
    %v558 = vsel %vm250, %v555, %v557
    %v559 = vsel %vm250, %v553, %v555
    %v560 = vsel %vm250, %v551, %v553
    %v561 = vsel %vm250, %v557, %v551
    %v562 = vmul.f32 %v560, %v258
    %v563 = vmul.f32 %v559, %v262
    %v564 = vmul.f32 %v558, %v266
    %v565 = vmul.f32 %v561, %v270
    %566 = vrot.lane.b32.xlu0 %v466, 112
    %v567 = vpop.permute.xlu0 %566
    %568 = vrot.lane.b32.xlu0 %v467, 112
    %v569 = vpop.permute.xlu0 %568
    %570 = vrot.lane.b32.xlu0 %v468, 112
    %v571 = vpop.permute.xlu0 %570
    %572 = vrot.lane.b32.xlu0 %v469, 112
    %v573 = vpop.permute.xlu0 %572
    %v574 = vsel %vm283, %v571, %v573
    %v575 = vsel %vm283, %v569, %v571
    %v576 = vsel %vm283, %v567, %v569
    %v577 = vsel %vm283, %v573, %v567
    %v578 = vmul.f32 %v576, %v291
    %v579 = vmul.f32 %v575, %v295
    %v580 = vmul.f32 %v574, %v299
    %v581 = vmul.f32 %v577, %v303
    %582 = vrot.lane.b32.xlu0 %v466, 111
    %v583 = vpop.permute.xlu0 %582
    %584 = vrot.lane.b32.xlu0 %v467, 111
    %v585 = vpop.permute.xlu0 %584
    %586 = vrot.lane.b32.xlu0 %v468, 111
    %v587 = vpop.permute.xlu0 %586
    %588 = vrot.lane.b32.xlu0 %v469, 111
    %v589 = vpop.permute.xlu0 %588
    %v590 = vsel %vm316, %v587, %v589
    %v591 = vsel %vm316, %v585, %v587
    %v592 = vsel %vm316, %v583, %v585
    %v593 = vsel %vm316, %v589, %v583
    %v594 = vmul.f32 %v592, %v324
    %v595 = vmul.f32 %v591, %v328
    %v596 = vmul.f32 %v590, %v332
    %v597 = vmul.f32 %v593, %v336
    %v598 = vpack.c.bf16 %v498, %v482
    %v599 = vpack.c.bf16 %v499, %v483
    %v600 = vpack.c.bf16 %v500, %v484
    %v601 = vpack.c.bf16 %v501, %v485
    %v602 = vpack.c.bf16 %v530, %v514
    %v603 = vpack.c.bf16 %v531, %v515
    %v604 = vpack.c.bf16 %v532, %v516
    %v605 = vpack.c.bf16 %v533, %v517
    %v606 = vpack.c.bf16 %v546, %v466
    %v607 = vpack.c.bf16 %v547, %v467
    %v608 = vpack.c.bf16 %v548, %v468
    %v609 = vpack.c.bf16 %v549, %v469
    %v610 = vpack.c.bf16 %v578, %v562
    %v611 = vpack.c.bf16 %v579, %v563
    %v612 = vpack.c.bf16 %v580, %v564
    %v613 = vpack.c.bf16 %v581, %v565
    %v614 = vpack.c.bf16 %v594, %v594
    %v615 = vpack.c.bf16 %v595, %v595
    %v616 = vpack.c.bf16 %v596, %v596
    %v617 = vpack.c.bf16 %v597, %v597
    %v618 = vld [vmem:[%s7] sm:$0xf]
    %v620 = vsel %vm368, %v618, 0
    %v623 = vsel %vm60, %v614, 0
    %v626 = vsel %vm60, %v615, 0
    %v629 = vsel %vm60, %v616, 0
    %v632 = vsel %vm60, %v617, 0
    %634 = vmatprep.subr.bf16.mxu0 %v599
    %635 = vmatpush1.bf16.msra.mxu0 %v598
    %636 = vmatprep.subr.bf16.mxu0 %v603
    %637 = vmatpush1.bf16.msra.mxu0 %v602
    %638 = vmatprep.subr.bf16.mxu0 %v607
    %639 = vmatpush1.bf16.msra.mxu0 %v606
    %640 = vmatprep.subr.bf16.mxu0 %v611
    %641 = vmatpush1.bf16.msra.mxu0 %v610
    %642 = vmatprep.subr.bf16.mxu0 %v626
    %643 = vmatpush1.bf16.msra.mxu0 %v623
    %644 = vmatprep.subr.bf16.mxu0 0
    %645 = vmatpush1.bf16.msra.mxu0 0
    %646 = vmatprep.subr.bf16.mxu0 0
    %647 = vmatpush1.bf16.msra.mxu0 0
    %648 = vmatprep.subr.bf16.mxu0 0
    %649 = vmatpush1.bf16.msra.mxu0 0
    %650 = vmatprep.subr.bf16.mxu0 0
    %651 = vmatpush1.bf16.msra.mxu0 0
    %652 = vmatprep.subr.bf16.mxu0 0
    %653 = vmatpush1.bf16.msra.mxu0 0
    %654 = vmatprep.subr.bf16.mxu0 0
    %655 = vmatpush1.bf16.msra.mxu0 0
    %656 = vmatprep.subr.bf16.mxu0 0
    %657 = vmatpush1.bf16.msra.mxu0 0
    %658 = vmatprep.subr.bf16.mxu0 0
    %659 = vmatpush1.bf16.msra.mxu0 0
    %660 = vmatprep.subr.bf16.mxu0 0
    %661 = vmatpush1.bf16.msra.mxu0 0
    %662 = vmatprep.subr.bf16.mxu0 0
    %663 = vmatpush1.bf16.msra.mxu0 0
    %664 = vmatprep.subr.bf16.mxu0 0
    %665 = vmatpush1.bf16.msra.mxu0 0
    %666 = vmatprep.mubr.bf16.mxu0 0
    %667 = vmatmul.mubr.bf16.gmra.mrb[0].mxu0 %v620
    %v668 = vpop.f32.mrb[0].mxu0
    %v669 = vadd.f32 0.0, %v668
    %v670 = vpop.f32.mrb[0].mxu0
    %v671 = vadd.f32 0.0, %v670
    %v672 = vpop.f32.mrb[0].mxu0
    %v673 = vpop.f32.mrb[0].mxu0
    %674 = vdwg.mxu0
    %675 = vmatprep.subr.bf16.mxu0 %v601
    %676 = vmatpush1.bf16.msra.mxu0 %v600
    %677 = vmatprep.subr.bf16.mxu0 %v605
    %678 = vmatpush1.bf16.msra.mxu0 %v604
    %679 = vmatprep.subr.bf16.mxu0 %v609
    %680 = vmatpush1.bf16.msra.mxu0 %v608
    %681 = vmatprep.subr.bf16.mxu0 %v613
    %682 = vmatpush1.bf16.msra.mxu0 %v612
    %683 = vmatprep.subr.bf16.mxu0 %v632
    %684 = vmatpush1.bf16.msra.mxu0 %v629
    %685 = vmatprep.subr.bf16.mxu0 0
    %686 = vmatpush1.bf16.msra.mxu0 0
    %687 = vmatprep.subr.bf16.mxu0 0
    %688 = vmatpush1.bf16.msra.mxu0 0
    %689 = vmatprep.subr.bf16.mxu0 0
    %690 = vmatpush1.bf16.msra.mxu0 0
    %691 = vmatprep.subr.bf16.mxu0 0
    %692 = vmatpush1.bf16.msra.mxu0 0
    %693 = vmatprep.subr.bf16.mxu0 0
    %694 = vmatpush1.bf16.msra.mxu0 0
    %695 = vmatprep.subr.bf16.mxu0 0
    %696 = vmatpush1.bf16.msra.mxu0 0
    %697 = vmatprep.subr.bf16.mxu0 0
    %698 = vmatpush1.bf16.msra.mxu0 0
    %699 = vmatprep.subr.bf16.mxu0 0
    %700 = vmatpush1.bf16.msra.mxu0 0
    %701 = vmatprep.subr.bf16.mxu0 0
    %702 = vmatpush1.bf16.msra.mxu0 0
    %703 = vmatprep.subr.bf16.mxu0 0
    %704 = vmatpush1.bf16.msra.mxu0 0
    %705 = vmatprep.subr.bf16.mxu0 0
    %706 = vmatpush1.bf16.msra.mxu0 0
    %707 = vmatprep.mubr.bf16.mxu0 0
    %708 = vmatmul.mubr.bf16.gmra.mrb[0].mxu0 %v620
    %v709 = vpop.f32.mrb[0].mxu0
    %v710 = vadd.f32 0.0, %v709
    %v711 = vpop.f32.mrb[0].mxu0
    %v712 = vadd.f32 0.0, %v711
    %v713 = vpop.f32.mrb[0].mxu0
    %v714 = vpop.f32.mrb[0].mxu0
    %715 = vdwg.mxu0
    %v716 = vmax.f32 %v669, 0.0
    %v717 = vmax.f32 %v671, 0.0
    %v718 = vmax.f32 %v710, 0.0
    %v719 = vmax.f32 %v712, 0.0
    %720 = vrot.lane.b32.xlu0 %v716, 17
    %v721 = vpop.permute.xlu0 %720
    %722 = vrot.lane.b32.xlu0 %v717, 17
    %v723 = vpop.permute.xlu0 %722
    %724 = vrot.lane.b32.xlu0 %v718, 17
    %v725 = vpop.permute.xlu0 %724
    %726 = vrot.lane.b32.xlu0 %v719, 17
    %v727 = vpop.permute.xlu0 %726
    %v728 = vsel %vm85, %v725, %v727
    %v729 = vsel %vm85, %v723, %v725
    %v730 = vsel %vm85, %v721, %v723
    %v731 = vsel %vm85, %v727, %v721
    %v732 = vmul.f32 %v731, %v93
    %v733 = vmul.f32 %v730, %v97
    %v734 = vmul.f32 %v729, %v101
    %v735 = vmul.f32 %v728, %v105
    %736 = vrot.lane.b32.xlu0 %v716, 16
    %v737 = vpop.permute.xlu0 %736
    %738 = vrot.lane.b32.xlu0 %v717, 16
    %v739 = vpop.permute.xlu0 %738
    %740 = vrot.lane.b32.xlu0 %v718, 16
    %v741 = vpop.permute.xlu0 %740
    %742 = vrot.lane.b32.xlu0 %v719, 16
    %v743 = vpop.permute.xlu0 %742
    %v744 = vsel %vm118, %v741, %v743
    %v745 = vsel %vm118, %v739, %v741
    %v746 = vsel %vm118, %v737, %v739
    %v747 = vsel %vm118, %v743, %v737
    %v748 = vmul.f32 %v747, %v126
    %v749 = vmul.f32 %v746, %v130
    %v750 = vmul.f32 %v745, %v134
    %v751 = vmul.f32 %v744, %v138
    %752 = vrot.lane.b32.xlu0 %v716, 15
    %v753 = vpop.permute.xlu0 %752
    %754 = vrot.lane.b32.xlu0 %v717, 15
    %v755 = vpop.permute.xlu0 %754
    %756 = vrot.lane.b32.xlu0 %v718, 15
    %v757 = vpop.permute.xlu0 %756
    %758 = vrot.lane.b32.xlu0 %v719, 15
    %v759 = vpop.permute.xlu0 %758
    %v760 = vsel %vm151, %v757, %v759
    %v761 = vsel %vm151, %v755, %v757
    %v762 = vsel %vm151, %v753, %v755
    %v763 = vsel %vm151, %v759, %v753
    %v764 = vmul.f32 %v763, %v159
    %v765 = vmul.f32 %v762, %v163
    %v766 = vmul.f32 %v761, %v167
    %v767 = vmul.f32 %v760, %v171
    %768 = vrot.lane.b32.xlu0 %v716, 1
    %v769 = vpop.permute.xlu0 %768
    %770 = vrot.lane.b32.xlu0 %v717, 1
    %v771 = vpop.permute.xlu0 %770
    %772 = vrot.lane.b32.xlu0 %v718, 1
    %v773 = vpop.permute.xlu0 %772
    %774 = vrot.lane.b32.xlu0 %v719, 1
    %v775 = vpop.permute.xlu0 %774
    %v776 = vsel %vm184, %v773, %v775
    %v777 = vsel %vm184, %v771, %v773
    %v778 = vsel %vm184, %v769, %v771
    %v779 = vsel %vm184, %v775, %v769
    %v780 = vmul.f32 %v779, %v192
    %v781 = vmul.f32 %v778, %v196
    %v782 = vmul.f32 %v777, %v200
    %v783 = vmul.f32 %v776, %v204
    %784 = vrot.lane.b32.xlu0 %v716, 127
    %v785 = vpop.permute.xlu0 %784
    %786 = vrot.lane.b32.xlu0 %v717, 127
    %v787 = vpop.permute.xlu0 %786
    %788 = vrot.lane.b32.xlu0 %v718, 127
    %v789 = vpop.permute.xlu0 %788
    %790 = vrot.lane.b32.xlu0 %v719, 127
    %v791 = vpop.permute.xlu0 %790
    %v792 = vsel %vm217, %v789, %v791
    %v793 = vsel %vm217, %v787, %v789
    %v794 = vsel %vm217, %v785, %v787
    %v795 = vsel %vm217, %v791, %v785
    %v796 = vmul.f32 %v794, %v225
    %v797 = vmul.f32 %v793, %v229
    %v798 = vmul.f32 %v792, %v233
    %v799 = vmul.f32 %v795, %v237
    %800 = vrot.lane.b32.xlu0 %v716, 113
    %v801 = vpop.permute.xlu0 %800
    %802 = vrot.lane.b32.xlu0 %v717, 113
    %v803 = vpop.permute.xlu0 %802
    %804 = vrot.lane.b32.xlu0 %v718, 113
    %v805 = vpop.permute.xlu0 %804
    %806 = vrot.lane.b32.xlu0 %v719, 113
    %v807 = vpop.permute.xlu0 %806
    %v808 = vsel %vm250, %v805, %v807
    %v809 = vsel %vm250, %v803, %v805
    %v810 = vsel %vm250, %v801, %v803
    %v811 = vsel %vm250, %v807, %v801
    %v812 = vmul.f32 %v810, %v258
    %v813 = vmul.f32 %v809, %v262
    %v814 = vmul.f32 %v808, %v266
    %v815 = vmul.f32 %v811, %v270
    %816 = vrot.lane.b32.xlu0 %v716, 112
    %v817 = vpop.permute.xlu0 %816
    %818 = vrot.lane.b32.xlu0 %v717, 112
    %v819 = vpop.permute.xlu0 %818
    %820 = vrot.lane.b32.xlu0 %v718, 112
    %v821 = vpop.permute.xlu0 %820
    %822 = vrot.lane.b32.xlu0 %v719, 112
    %v823 = vpop.permute.xlu0 %822
    %v824 = vsel %vm283, %v821, %v823
    %v825 = vsel %vm283, %v819, %v821
    %v826 = vsel %vm283, %v817, %v819
    %v827 = vsel %vm283, %v823, %v817
    %v828 = vmul.f32 %v826, %v291
    %v829 = vmul.f32 %v825, %v295
    %v830 = vmul.f32 %v824, %v299
    %v831 = vmul.f32 %v827, %v303
    %832 = vrot.lane.b32.xlu0 %v716, 111
    %v833 = vpop.permute.xlu0 %832
    %834 = vrot.lane.b32.xlu0 %v717, 111
    %v835 = vpop.permute.xlu0 %834
    %836 = vrot.lane.b32.xlu0 %v718, 111
    %v837 = vpop.permute.xlu0 %836
    %838 = vrot.lane.b32.xlu0 %v719, 111
    %v839 = vpop.permute.xlu0 %838
    %v840 = vsel %vm316, %v837, %v839
    %v841 = vsel %vm316, %v835, %v837
    %v842 = vsel %vm316, %v833, %v835
    %v843 = vsel %vm316, %v839, %v833
    %v844 = vmul.f32 %v842, %v324
    %v845 = vmul.f32 %v841, %v328
    %v846 = vmul.f32 %v840, %v332
    %v847 = vmul.f32 %v843, %v336
    %v848 = vpack.c.bf16 %v748, %v732
    %v849 = vpack.c.bf16 %v749, %v733
    %v850 = vpack.c.bf16 %v750, %v734
    %v851 = vpack.c.bf16 %v751, %v735
    %v852 = vpack.c.bf16 %v780, %v764
    %v853 = vpack.c.bf16 %v781, %v765
    %v854 = vpack.c.bf16 %v782, %v766
    %v855 = vpack.c.bf16 %v783, %v767
    %v856 = vpack.c.bf16 %v796, %v716
    %v857 = vpack.c.bf16 %v797, %v717
    %v858 = vpack.c.bf16 %v798, %v718
    %v859 = vpack.c.bf16 %v799, %v719
    %v860 = vpack.c.bf16 %v828, %v812
    %v861 = vpack.c.bf16 %v829, %v813
    %v862 = vpack.c.bf16 %v830, %v814
    %v863 = vpack.c.bf16 %v831, %v815
    %v864 = vpack.c.bf16 %v844, %v844
    %v865 = vpack.c.bf16 %v845, %v845
    %v866 = vpack.c.bf16 %v846, %v846
    %v867 = vpack.c.bf16 %v847, %v847
    %v868 = vld [vmem:[%s8] sm:$0xf]
    %v870 = vsel %vm368, %v868, 0
    %v873 = vsel %vm60, %v864, 0
    %v876 = vsel %vm60, %v865, 0
    %v879 = vsel %vm60, %v866, 0
    %v882 = vsel %vm60, %v867, 0
    %884 = vmatprep.subr.bf16.mxu0 %v849
    %885 = vmatpush1.bf16.msra.mxu0 %v848
    %886 = vmatprep.subr.bf16.mxu0 %v853
    %887 = vmatpush1.bf16.msra.mxu0 %v852
    %888 = vmatprep.subr.bf16.mxu0 %v857
    %889 = vmatpush1.bf16.msra.mxu0 %v856
    %890 = vmatprep.subr.bf16.mxu0 %v861
    %891 = vmatpush1.bf16.msra.mxu0 %v860
    %892 = vmatprep.subr.bf16.mxu0 %v876
    %893 = vmatpush1.bf16.msra.mxu0 %v873
    %894 = vmatprep.subr.bf16.mxu0 0
    %895 = vmatpush1.bf16.msra.mxu0 0
    %896 = vmatprep.subr.bf16.mxu0 0
    %897 = vmatpush1.bf16.msra.mxu0 0
    %898 = vmatprep.subr.bf16.mxu0 0
    %899 = vmatpush1.bf16.msra.mxu0 0
    %900 = vmatprep.subr.bf16.mxu0 0
    %901 = vmatpush1.bf16.msra.mxu0 0
    %902 = vmatprep.subr.bf16.mxu0 0
    %903 = vmatpush1.bf16.msra.mxu0 0
    %904 = vmatprep.subr.bf16.mxu0 0
    %905 = vmatpush1.bf16.msra.mxu0 0
    %906 = vmatprep.subr.bf16.mxu0 0
    %907 = vmatpush1.bf16.msra.mxu0 0
    %908 = vmatprep.subr.bf16.mxu0 0
    %909 = vmatpush1.bf16.msra.mxu0 0
    %910 = vmatprep.subr.bf16.mxu0 0
    %911 = vmatpush1.bf16.msra.mxu0 0
    %912 = vmatprep.subr.bf16.mxu0 0
    %913 = vmatpush1.bf16.msra.mxu0 0
    %914 = vmatprep.subr.bf16.mxu0 0
    %915 = vmatpush1.bf16.msra.mxu0 0
    %916 = vmatprep.mubr.bf16.mxu0 0
    %917 = vmatmul.mubr.bf16.gmra.mrb[0].mxu0 %v870
    %v918 = vpop.f32.mrb[0].mxu0
    %v919 = vadd.f32 %v466, %v918
    %v920 = vpop.f32.mrb[0].mxu0
    %v921 = vadd.f32 %v467, %v920
    %v922 = vpop.f32.mrb[0].mxu0
    %v923 = vpop.f32.mrb[0].mxu0
    %924 = vdwg.mxu0
    %925 = vmatprep.subr.bf16.mxu0 %v851
    %926 = vmatpush1.bf16.msra.mxu0 %v850
    %927 = vmatprep.subr.bf16.mxu0 %v855
    %928 = vmatpush1.bf16.msra.mxu0 %v854
    %929 = vmatprep.subr.bf16.mxu0 %v859
    %930 = vmatpush1.bf16.msra.mxu0 %v858
    %931 = vmatprep.subr.bf16.mxu0 %v863
    %932 = vmatpush1.bf16.msra.mxu0 %v862
    %933 = vmatprep.subr.bf16.mxu0 %v882
    %934 = vmatpush1.bf16.msra.mxu0 %v879
    %935 = vmatprep.subr.bf16.mxu0 0
    %936 = vmatpush1.bf16.msra.mxu0 0
    %937 = vmatprep.subr.bf16.mxu0 0
    %938 = vmatpush1.bf16.msra.mxu0 0
    %939 = vmatprep.subr.bf16.mxu0 0
    %940 = vmatpush1.bf16.msra.mxu0 0
    %941 = vmatprep.subr.bf16.mxu0 0
    %942 = vmatpush1.bf16.msra.mxu0 0
    %943 = vmatprep.subr.bf16.mxu0 0
    %944 = vmatpush1.bf16.msra.mxu0 0
    %945 = vmatprep.subr.bf16.mxu0 0
    %946 = vmatpush1.bf16.msra.mxu0 0
    %947 = vmatprep.subr.bf16.mxu0 0
    %948 = vmatpush1.bf16.msra.mxu0 0
    %949 = vmatprep.subr.bf16.mxu0 0
    %950 = vmatpush1.bf16.msra.mxu0 0
    %951 = vmatprep.subr.bf16.mxu0 0
    %952 = vmatpush1.bf16.msra.mxu0 0
    %953 = vmatprep.subr.bf16.mxu0 0
    %954 = vmatpush1.bf16.msra.mxu0 0
    %955 = vmatprep.subr.bf16.mxu0 0
    %956 = vmatpush1.bf16.msra.mxu0 0
    %957 = vmatprep.mubr.bf16.mxu0 0
    %958 = vmatmul.mubr.bf16.gmra.mrb[0].mxu0 %v870
    %v959 = vpop.f32.mrb[0].mxu0
    %v960 = vadd.f32 %v468, %v959
    %v961 = vpop.f32.mrb[0].mxu0
    %v962 = vadd.f32 %v469, %v961
    %v963 = vpop.f32.mrb[0].mxu0
    %v964 = vpop.f32.mrb[0].mxu0
    %965 = vdwg.mxu0
    %v966 = vmax.f32 %v919, 0.0
    %v967 = vmax.f32 %v921, 0.0
    %v968 = vmax.f32 %v960, 0.0
    %v969 = vmax.f32 %v962, 0.0
    %v970 = vld [vmem:[%s11] sm:$0xf]
    %v971 = vld [vmem:[%s11 + $0x4] sm:$0xf]
    %v972 = vpack.c.bf16 %v966, %v966
    %v973 = vpack.c.bf16 %v967, %v967
    %v974 = vpack.c.bf16 %v968, %v968
    %v975 = vpack.c.bf16 %v969, %v969
    %v978 = vunpack.c.l.b16 %v970
    %v979 = vunpack.c.l.b16 %v971
    %v980 = vpack.c.b16 %v979, %v978
    %vm981 = vcmask 64512
    %v983 = vsel %vm981, %v980, 0
    %v986 = vsel %vm60, %v972, 0
    %v989 = vsel %vm60, %v973, 0
    %v992 = vsel %vm60, %v974, 0
    %v995 = vsel %vm60, %v975, 0
    %997 = vmatprep.subr.bf16.mxu0 %v989
    %998 = vmatpush1.bf16.msra.mxu0 %v986
    %999 = vmatprep.subr.bf16.mxu0 0
    %1000 = vmatpush1.bf16.msra.mxu0 0
    %1001 = vmatprep.subr.bf16.mxu0 0
    %1002 = vmatpush1.bf16.msra.mxu0 0
    %1003 = vmatprep.subr.bf16.mxu0 0
    %1004 = vmatpush1.bf16.msra.mxu0 0
    %1005 = vmatprep.subr.bf16.mxu0 0
    %1006 = vmatpush1.bf16.msra.mxu0 0
    %1007 = vmatprep.subr.bf16.mxu0 0
    %1008 = vmatpush1.bf16.msra.mxu0 0
    %1009 = vmatprep.subr.bf16.mxu0 0
    %1010 = vmatpush1.bf16.msra.mxu0 0
    %1011 = vmatprep.subr.bf16.mxu0 0
    %1012 = vmatpush1.bf16.msra.mxu0 0
    %1013 = vmatprep.subr.bf16.mxu0 0
    %1014 = vmatpush1.bf16.msra.mxu0 0
    %1015 = vmatprep.subr.bf16.mxu0 0
    %1016 = vmatpush1.bf16.msra.mxu0 0
    %1017 = vmatprep.subr.bf16.mxu0 0
    %1018 = vmatpush1.bf16.msra.mxu0 0
    %1019 = vmatprep.subr.bf16.mxu0 0
    %1020 = vmatpush1.bf16.msra.mxu0 0
    %1021 = vmatprep.subr.bf16.mxu0 0
    %1022 = vmatpush1.bf16.msra.mxu0 0
    %1023 = vmatprep.subr.bf16.mxu0 0
    %1024 = vmatpush1.bf16.msra.mxu0 0
    %1025 = vmatprep.subr.bf16.mxu0 0
    %1026 = vmatpush1.bf16.msra.mxu0 0
    %1027 = vmatprep.subr.bf16.mxu0 0
    %1028 = vmatpush1.bf16.msra.mxu0 0
    %1029 = vmatprep.mubr.bf16.mxu0 0
    %1030 = vmatmul.mubr.bf16.gmra.mrb[0].mxu0 %v983
    %v1031 = vpop.f32.mrb[0].mxu0
    %v1032 = vadd.f32 0.0, %v1031
    %v1033 = vpop.f32.mrb[0].mxu0
    %v1034 = vadd.f32 0.0, %v1033
    %v1035 = vpop.f32.mrb[0].mxu0
    %v1036 = vadd.f32 0.0, %v1035
    %v1037 = vpop.f32.mrb[0].mxu0
    %v1038 = vadd.f32 0.0, %v1037
    %1039 = vdwg.mxu0
    %1040 = vmatprep.subr.bf16.mxu0 %v995
    %1041 = vmatpush1.bf16.msra.mxu0 %v992
    %1042 = vmatprep.subr.bf16.mxu0 0
    %1043 = vmatpush1.bf16.msra.mxu0 0
    %1044 = vmatprep.subr.bf16.mxu0 0
    %1045 = vmatpush1.bf16.msra.mxu0 0
    %1046 = vmatprep.subr.bf16.mxu0 0
    %1047 = vmatpush1.bf16.msra.mxu0 0
    %1048 = vmatprep.subr.bf16.mxu0 0
    %1049 = vmatpush1.bf16.msra.mxu0 0
    %1050 = vmatprep.subr.bf16.mxu0 0
    %1051 = vmatpush1.bf16.msra.mxu0 0
    %1052 = vmatprep.subr.bf16.mxu0 0
    %1053 = vmatpush1.bf16.msra.mxu0 0
    %1054 = vmatprep.subr.bf16.mxu0 0
    %1055 = vmatpush1.bf16.msra.mxu0 0
    %1056 = vmatprep.subr.bf16.mxu0 0
    %1057 = vmatpush1.bf16.msra.mxu0 0
    %1058 = vmatprep.subr.bf16.mxu0 0
    %1059 = vmatpush1.bf16.msra.mxu0 0
    %1060 = vmatprep.subr.bf16.mxu0 0
    %1061 = vmatpush1.bf16.msra.mxu0 0
    %1062 = vmatprep.subr.bf16.mxu0 0
    %1063 = vmatpush1.bf16.msra.mxu0 0
    %1064 = vmatprep.subr.bf16.mxu0 0
    %1065 = vmatpush1.bf16.msra.mxu0 0
    %1066 = vmatprep.subr.bf16.mxu0 0
    %1067 = vmatpush1.bf16.msra.mxu0 0
    %1068 = vmatprep.subr.bf16.mxu0 0
    %1069 = vmatpush1.bf16.msra.mxu0 0
    %1070 = vmatprep.subr.bf16.mxu0 0
    %1071 = vmatpush1.bf16.msra.mxu0 0
    %1072 = vmatprep.mubr.bf16.mxu0 0
    %1073 = vmatmul.mubr.bf16.gmra.mrb[0].mxu0 %v983
    %v1074 = vpop.f32.mrb[0].mxu0
    %v1075 = vadd.f32 0.0, %v1074
    %v1076 = vpop.f32.mrb[0].mxu0
    %v1077 = vadd.f32 0.0, %v1076
    %v1078 = vpop.f32.mrb[0].mxu0
    %v1079 = vadd.f32 0.0, %v1078
    %v1080 = vpop.f32.mrb[0].mxu0
    %v1081 = vadd.f32 0.0, %v1080
    %1082 = vdwg.mxu0
    %1083 = vrot.lane.b32.xlu0 %v966, 17
    %v1084 = vpop.permute.xlu0 %1083
    %1085 = vrot.lane.b32.xlu0 %v967, 17
    %v1086 = vpop.permute.xlu0 %1085
    %1087 = vrot.lane.b32.xlu0 %v968, 17
    %v1088 = vpop.permute.xlu0 %1087
    %1089 = vrot.lane.b32.xlu0 %v969, 17
    %v1090 = vpop.permute.xlu0 %1089
    %v1091 = vsel %vm85, %v1088, %v1090
    %v1092 = vsel %vm85, %v1086, %v1088
    %v1093 = vsel %vm85, %v1084, %v1086
    %v1094 = vsel %vm85, %v1090, %v1084
    %v1095 = vmul.f32 %v1094, %v93
    %v1096 = vmul.f32 %v1093, %v97
    %v1097 = vmul.f32 %v1092, %v101
    %v1098 = vmul.f32 %v1091, %v105
    %1099 = vrot.lane.b32.xlu0 %v966, 16
    %v1100 = vpop.permute.xlu0 %1099
    %1101 = vrot.lane.b32.xlu0 %v967, 16
    %v1102 = vpop.permute.xlu0 %1101
    %1103 = vrot.lane.b32.xlu0 %v968, 16
    %v1104 = vpop.permute.xlu0 %1103
    %1105 = vrot.lane.b32.xlu0 %v969, 16
    %v1106 = vpop.permute.xlu0 %1105
    %v1107 = vsel %vm118, %v1104, %v1106
    %v1108 = vsel %vm118, %v1102, %v1104
    %v1109 = vsel %vm118, %v1100, %v1102
    %v1110 = vsel %vm118, %v1106, %v1100
    %v1111 = vmul.f32 %v1110, %v126
    %v1112 = vmul.f32 %v1109, %v130
    %v1113 = vmul.f32 %v1108, %v134
    %v1114 = vmul.f32 %v1107, %v138
    %1115 = vrot.lane.b32.xlu0 %v966, 15
    %v1116 = vpop.permute.xlu0 %1115
    %1117 = vrot.lane.b32.xlu0 %v967, 15
    %v1118 = vpop.permute.xlu0 %1117
    %1119 = vrot.lane.b32.xlu0 %v968, 15
    %v1120 = vpop.permute.xlu0 %1119
    %1121 = vrot.lane.b32.xlu0 %v969, 15
    %v1122 = vpop.permute.xlu0 %1121
    %v1123 = vsel %vm151, %v1120, %v1122
    %v1124 = vsel %vm151, %v1118, %v1120
    %v1125 = vsel %vm151, %v1116, %v1118
    %v1126 = vsel %vm151, %v1122, %v1116
    %v1127 = vmul.f32 %v1126, %v159
    %v1128 = vmul.f32 %v1125, %v163
    %v1129 = vmul.f32 %v1124, %v167
    %v1130 = vmul.f32 %v1123, %v171
    %1131 = vrot.lane.b32.xlu0 %v966, 1
    %v1132 = vpop.permute.xlu0 %1131
    %1133 = vrot.lane.b32.xlu0 %v967, 1
    %v1134 = vpop.permute.xlu0 %1133
    %1135 = vrot.lane.b32.xlu0 %v968, 1
    %v1136 = vpop.permute.xlu0 %1135
    %1137 = vrot.lane.b32.xlu0 %v969, 1
    %v1138 = vpop.permute.xlu0 %1137
    %v1139 = vsel %vm184, %v1136, %v1138
    %v1140 = vsel %vm184, %v1134, %v1136
    %v1141 = vsel %vm184, %v1132, %v1134
    %v1142 = vsel %vm184, %v1138, %v1132
    %v1143 = vmul.f32 %v1142, %v192
    %v1144 = vmul.f32 %v1141, %v196
    %v1145 = vmul.f32 %v1140, %v200
    %v1146 = vmul.f32 %v1139, %v204
    %1147 = vrot.lane.b32.xlu0 %v966, 127
    %v1148 = vpop.permute.xlu0 %1147
    %1149 = vrot.lane.b32.xlu0 %v967, 127
    %v1150 = vpop.permute.xlu0 %1149
    %1151 = vrot.lane.b32.xlu0 %v968, 127
    %v1152 = vpop.permute.xlu0 %1151
    %1153 = vrot.lane.b32.xlu0 %v969, 127
    %v1154 = vpop.permute.xlu0 %1153
    %v1155 = vsel %vm217, %v1152, %v1154
    %v1156 = vsel %vm217, %v1150, %v1152
    %v1157 = vsel %vm217, %v1148, %v1150
    %v1158 = vsel %vm217, %v1154, %v1148
    %v1159 = vmul.f32 %v1157, %v225
    %v1160 = vmul.f32 %v1156, %v229
    %v1161 = vmul.f32 %v1155, %v233
    %v1162 = vmul.f32 %v1158, %v237
    %1163 = vrot.lane.b32.xlu0 %v966, 113
    %v1164 = vpop.permute.xlu0 %1163
    %1165 = vrot.lane.b32.xlu0 %v967, 113
    %v1166 = vpop.permute.xlu0 %1165
    %1167 = vrot.lane.b32.xlu0 %v968, 113
    %v1168 = vpop.permute.xlu0 %1167
    %1169 = vrot.lane.b32.xlu0 %v969, 113
    %v1170 = vpop.permute.xlu0 %1169
    %v1171 = vsel %vm250, %v1168, %v1170
    %v1172 = vsel %vm250, %v1166, %v1168
    %v1173 = vsel %vm250, %v1164, %v1166
    %v1174 = vsel %vm250, %v1170, %v1164
    %v1175 = vmul.f32 %v1173, %v258
    %v1176 = vmul.f32 %v1172, %v262
    %v1177 = vmul.f32 %v1171, %v266
    %v1178 = vmul.f32 %v1174, %v270
    %1179 = vrot.lane.b32.xlu0 %v966, 112
    %v1180 = vpop.permute.xlu0 %1179
    %1181 = vrot.lane.b32.xlu0 %v967, 112
    %v1182 = vpop.permute.xlu0 %1181
    %1183 = vrot.lane.b32.xlu0 %v968, 112
    %v1184 = vpop.permute.xlu0 %1183
    %1185 = vrot.lane.b32.xlu0 %v969, 112
    %v1186 = vpop.permute.xlu0 %1185
    %v1187 = vsel %vm283, %v1184, %v1186
    %v1188 = vsel %vm283, %v1182, %v1184
    %v1189 = vsel %vm283, %v1180, %v1182
    %v1190 = vsel %vm283, %v1186, %v1180
    %v1191 = vmul.f32 %v1189, %v291
    %v1192 = vmul.f32 %v1188, %v295
    %v1193 = vmul.f32 %v1187, %v299
    %v1194 = vmul.f32 %v1190, %v303
    %1195 = vrot.lane.b32.xlu0 %v966, 111
    %v1196 = vpop.permute.xlu0 %1195
    %1197 = vrot.lane.b32.xlu0 %v967, 111
    %v1198 = vpop.permute.xlu0 %1197
    %1199 = vrot.lane.b32.xlu0 %v968, 111
    %v1200 = vpop.permute.xlu0 %1199
    %1201 = vrot.lane.b32.xlu0 %v969, 111
    %v1202 = vpop.permute.xlu0 %1201
    %v1203 = vsel %vm316, %v1200, %v1202
    %v1204 = vsel %vm316, %v1198, %v1200
    %v1205 = vsel %vm316, %v1196, %v1198
    %v1206 = vsel %vm316, %v1202, %v1196
    %v1207 = vmul.f32 %v1205, %v324
    %v1208 = vmul.f32 %v1204, %v328
    %v1209 = vmul.f32 %v1203, %v332
    %v1210 = vmul.f32 %v1206, %v336
    %v1211 = vpack.c.bf16 %v1111, %v1095
    %v1212 = vpack.c.bf16 %v1112, %v1096
    %v1213 = vpack.c.bf16 %v1113, %v1097
    %v1214 = vpack.c.bf16 %v1114, %v1098
    %v1215 = vpack.c.bf16 %v1143, %v1127
    %v1216 = vpack.c.bf16 %v1144, %v1128
    %v1217 = vpack.c.bf16 %v1145, %v1129
    %v1218 = vpack.c.bf16 %v1146, %v1130
    %v1219 = vpack.c.bf16 %v1159, %v966
    %v1220 = vpack.c.bf16 %v1160, %v967
    %v1221 = vpack.c.bf16 %v1161, %v968
    %v1222 = vpack.c.bf16 %v1162, %v969
    %v1223 = vpack.c.bf16 %v1191, %v1175
    %v1224 = vpack.c.bf16 %v1192, %v1176
    %v1225 = vpack.c.bf16 %v1193, %v1177
    %v1226 = vpack.c.bf16 %v1194, %v1178
    %v1227 = vpack.c.bf16 %v1207, %v1207
    %v1228 = vpack.c.bf16 %v1208, %v1208
    %v1229 = vpack.c.bf16 %v1209, %v1209
    %v1230 = vpack.c.bf16 %v1210, %v1210
    %v1231 = vld [vmem:[%s9] sm:$0xf]
    %v1232 = vld [vmem:[%s9 + $0x4] sm:$0xf]
    %v1235 = vunpack.c.l.b16 %v1231
    %v1236 = vunpack.c.l.b16 %v1232
    %v1237 = vpack.c.b16 %v1236, %v1235
    %v1239 = vsel %vm368, %v1237, 0
    %v1242 = vsel %vm60, %v1227, 0
    %v1245 = vsel %vm60, %v1228, 0
    %v1248 = vsel %vm60, %v1229, 0
    %v1251 = vsel %vm60, %v1230, 0
    %1253 = vmatprep.subr.bf16.mxu0 %v1212
    %1254 = vmatpush1.bf16.msra.mxu0 %v1211
    %1255 = vmatprep.subr.bf16.mxu0 %v1216
    %1256 = vmatpush1.bf16.msra.mxu0 %v1215
    %1257 = vmatprep.subr.bf16.mxu0 %v1220
    %1258 = vmatpush1.bf16.msra.mxu0 %v1219
    %1259 = vmatprep.subr.bf16.mxu0 %v1224
    %1260 = vmatpush1.bf16.msra.mxu0 %v1223
    %1261 = vmatprep.subr.bf16.mxu0 %v1245
    %1262 = vmatpush1.bf16.msra.mxu0 %v1242
    %1263 = vmatprep.subr.bf16.mxu0 0
    %1264 = vmatpush1.bf16.msra.mxu0 0
    %1265 = vmatprep.subr.bf16.mxu0 0
    %1266 = vmatpush1.bf16.msra.mxu0 0
    %1267 = vmatprep.subr.bf16.mxu0 0
    %1268 = vmatpush1.bf16.msra.mxu0 0
    %1269 = vmatprep.subr.bf16.mxu0 0
    %1270 = vmatpush1.bf16.msra.mxu0 0
    %1271 = vmatprep.subr.bf16.mxu0 0
    %1272 = vmatpush1.bf16.msra.mxu0 0
    %1273 = vmatprep.subr.bf16.mxu0 0
    %1274 = vmatpush1.bf16.msra.mxu0 0
    %1275 = vmatprep.subr.bf16.mxu0 0
    %1276 = vmatpush1.bf16.msra.mxu0 0
    %1277 = vmatprep.subr.bf16.mxu0 0
    %1278 = vmatpush1.bf16.msra.mxu0 0
    %1279 = vmatprep.subr.bf16.mxu0 0
    %1280 = vmatpush1.bf16.msra.mxu0 0
    %1281 = vmatprep.subr.bf16.mxu0 0
    %1282 = vmatpush1.bf16.msra.mxu0 0
    %1283 = vmatprep.subr.bf16.mxu0 0
    %1284 = vmatpush1.bf16.msra.mxu0 0
    %1285 = vmatprep.mubr.bf16.mxu0 0
    %1286 = vmatmul.mubr.bf16.gmra.mrb[0].mxu0 %v1239
    %v1287 = vpop.f32.mrb[0].mxu0
    %v1288 = vadd.f32 0.0, %v1287
    %v1289 = vpop.f32.mrb[0].mxu0
    %v1290 = vadd.f32 0.0, %v1289
    %v1291 = vpop.f32.mrb[0].mxu0
    %v1292 = vadd.f32 0.0, %v1291
    %v1293 = vpop.f32.mrb[0].mxu0
    %v1294 = vadd.f32 0.0, %v1293
    %1295 = vdwg.mxu0
    %1296 = vmatprep.subr.bf16.mxu0 %v1214
    %1297 = vmatpush1.bf16.msra.mxu0 %v1213
    %1298 = vmatprep.subr.bf16.mxu0 %v1218
    %1299 = vmatpush1.bf16.msra.mxu0 %v1217
    %1300 = vmatprep.subr.bf16.mxu0 %v1222
    %1301 = vmatpush1.bf16.msra.mxu0 %v1221
    %1302 = vmatprep.subr.bf16.mxu0 %v1226
    %1303 = vmatpush1.bf16.msra.mxu0 %v1225
    %1304 = vmatprep.subr.bf16.mxu0 %v1251
    %1305 = vmatpush1.bf16.msra.mxu0 %v1248
    %1306 = vmatprep.subr.bf16.mxu0 0
    %1307 = vmatpush1.bf16.msra.mxu0 0
    %1308 = vmatprep.subr.bf16.mxu0 0
    %1309 = vmatpush1.bf16.msra.mxu0 0
    %1310 = vmatprep.subr.bf16.mxu0 0
    %1311 = vmatpush1.bf16.msra.mxu0 0
    %1312 = vmatprep.subr.bf16.mxu0 0
    %1313 = vmatpush1.bf16.msra.mxu0 0
    %1314 = vmatprep.subr.bf16.mxu0 0
    %1315 = vmatpush1.bf16.msra.mxu0 0
    %1316 = vmatprep.subr.bf16.mxu0 0
    %1317 = vmatpush1.bf16.msra.mxu0 0
    %1318 = vmatprep.subr.bf16.mxu0 0
    %1319 = vmatpush1.bf16.msra.mxu0 0
    %1320 = vmatprep.subr.bf16.mxu0 0
    %1321 = vmatpush1.bf16.msra.mxu0 0
    %1322 = vmatprep.subr.bf16.mxu0 0
    %1323 = vmatpush1.bf16.msra.mxu0 0
    %1324 = vmatprep.subr.bf16.mxu0 0
    %1325 = vmatpush1.bf16.msra.mxu0 0
    %1326 = vmatprep.subr.bf16.mxu0 0
    %1327 = vmatpush1.bf16.msra.mxu0 0
    %1328 = vmatprep.mubr.bf16.mxu0 0
    %1329 = vmatmul.mubr.bf16.gmra.mrb[0].mxu0 %v1239
    %v1330 = vpop.f32.mrb[0].mxu0
    %v1331 = vadd.f32 0.0, %v1330
    %v1332 = vpop.f32.mrb[0].mxu0
    %v1333 = vadd.f32 0.0, %v1332
    %v1334 = vpop.f32.mrb[0].mxu0
    %v1335 = vadd.f32 0.0, %v1334
    %v1336 = vpop.f32.mrb[0].mxu0
    %v1337 = vadd.f32 0.0, %v1336
    %1338 = vdwg.mxu0
    %v1339 = vpack.c.bf16 %v1036, %v1032
    %v1340 = vpack.c.bf16 %v1038, %v1034
    %v1341 = vpack.c.bf16 %v1079, %v1075
    %v1342 = vpack.c.bf16 %v1081, %v1077
    %v1343 = vpack.c.bf16 %v1292, %v1288
    %v1344 = vpack.c.bf16 %v1294, %v1290
    %v1345 = vpack.c.bf16 %v1335, %v1331
    %v1346 = vpack.c.bf16 %v1337, %v1333
    %v1347 = vld [vmem:[%s3] sm:$0xf]
    %v1348 = vld [vmem:[%s3 + $0x4] sm:$0xf]
    %v1349 = vld [vmem:[%s3 + $0x8] sm:$0xf]
    %v1350 = vld [vmem:[%s3 + $0xc] sm:$0xf]
    %v1351 = vld [vmem:[%s3 + $0x10] sm:$0xf]
    %v1352 = vld [vmem:[%s3 + $0x14] sm:$0xf]
    %v1353 = vld [vmem:[%s3 + $0x18] sm:$0xf]
    %v1354 = vld [vmem:[%s3 + $0x1c] sm:$0xf]
    %v1355 = vld [vmem:[%s3 + $0x20] sm:$0xf]
    %v1356 = vld [vmem:[%s3 + $0x24] sm:$0xf]
    %v1357 = vld [vmem:[%s3 + $0x28] sm:$0xf]
    %v1358 = vld [vmem:[%s3 + $0x2c] sm:$0xf]
    %v1359 = vld [vmem:[%s3 + $0x30] sm:$0xf]
    %v1360 = vld [vmem:[%s3 + $0x34] sm:$0xf]
    %v1361 = vld [vmem:[%s3 + $0x38] sm:$0xf]
    %v1362 = vld [vmem:[%s3 + $0x3c] sm:$0xf]
    %v1363 = vld [vmem:[%s3 + $0x40] sm:$0xf]
    %v1364 = vld [vmem:[%s3 + $0x44] sm:$0xf]
    %v1365 = vld [vmem:[%s3 + $0x48] sm:$0xf]
    %v1366 = vld [vmem:[%s3 + $0x4c] sm:$0xf]
    %v1367 = vld [vmem:[%s3 + $0x50] sm:$0xf]
    %v1368 = vld [vmem:[%s3 + $0x54] sm:$0xf]
    %v1369 = vld [vmem:[%s3 + $0x58] sm:$0xf]
    %v1370 = vld [vmem:[%s3 + $0x5c] sm:$0xf]
    %v1371 = vld [vmem:[%s3 + $0x60] sm:$0xf]
    %v1372 = vld [vmem:[%s3 + $0x64] sm:$0xf]
    %v1373 = vld [vmem:[%s3 + $0x68] sm:$0xf]
    %v1374 = vld [vmem:[%s3 + $0x6c] sm:$0xf]
    %v1375 = vld [vmem:[%s3 + $0x70] sm:$0xf]
    %v1376 = vld [vmem:[%s3 + $0x74] sm:$0xf]
    %v1377 = vld [vmem:[%s3 + $0x78] sm:$0xf]
    %v1378 = vld [vmem:[%s3 + $0x7c] sm:$0xf]
    %v1411 = vunpack.c.l.b16 %v1347
    %v1412 = vunpack.c.l.b16 %v1348
    %v1413 = vunpack.c.l.b16 %v1349
    %v1414 = vunpack.c.l.b16 %v1350
    %v1415 = vunpack.c.l.b16 %v1351
    %v1416 = vunpack.c.l.b16 %v1352
    %v1417 = vunpack.c.l.b16 %v1353
    %v1418 = vunpack.c.l.b16 %v1354
    %v1419 = vunpack.c.l.b16 %v1355
    %v1420 = vunpack.c.l.b16 %v1356
    %v1421 = vunpack.c.l.b16 %v1357
    %v1422 = vunpack.c.l.b16 %v1358
    %v1423 = vunpack.c.l.b16 %v1359
    %v1424 = vunpack.c.l.b16 %v1360
    %v1425 = vunpack.c.l.b16 %v1361
    %v1426 = vunpack.c.l.b16 %v1362
    %v1427 = vunpack.c.l.b16 %v1363
    %v1428 = vunpack.c.l.b16 %v1364
    %v1429 = vunpack.c.l.b16 %v1365
    %v1430 = vunpack.c.l.b16 %v1366
    %v1431 = vunpack.c.l.b16 %v1367
    %v1432 = vunpack.c.l.b16 %v1368
    %v1433 = vunpack.c.l.b16 %v1369
    %v1434 = vunpack.c.l.b16 %v1370
    %v1435 = vunpack.c.l.b16 %v1371
    %v1436 = vunpack.c.l.b16 %v1372
    %v1437 = vunpack.c.l.b16 %v1373
    %v1438 = vunpack.c.l.b16 %v1374
    %v1439 = vunpack.c.l.b16 %v1375
    %v1440 = vunpack.c.l.b16 %v1376
    %v1441 = vunpack.c.l.b16 %v1377
    %v1442 = vunpack.c.l.b16 %v1378
    %v1443 = vpack.c.b16 %v1412, %v1411
    %v1444 = vpack.c.b16 %v1414, %v1413
    %v1445 = vpack.c.b16 %v1416, %v1415
    %v1446 = vpack.c.b16 %v1418, %v1417
    %v1447 = vpack.c.b16 %v1420, %v1419
    %v1448 = vpack.c.b16 %v1422, %v1421
    %v1449 = vpack.c.b16 %v1424, %v1423
    %v1450 = vpack.c.b16 %v1426, %v1425
    %v1451 = vpack.c.b16 %v1428, %v1427
    %v1452 = vpack.c.b16 %v1430, %v1429
    %v1453 = vpack.c.b16 %v1432, %v1431
    %v1454 = vpack.c.b16 %v1434, %v1433
    %v1455 = vpack.c.b16 %v1436, %v1435
    %v1456 = vpack.c.b16 %v1438, %v1437
    %v1457 = vpack.c.b16 %v1440, %v1439
    %v1458 = vpack.c.b16 %v1442, %v1441
    %1475 = vmatprep.subr.bf16.mxu0 0
    %1476 = vmatpush1.bf16.msra.mxu0 %v1443
    %1477 = vmatprep.subr.bf16.mxu0 0
    %1478 = vmatpush1.bf16.msra.mxu0 %v1444
    %1479 = vmatprep.subr.bf16.mxu0 0
    %1480 = vmatpush1.bf16.msra.mxu0 %v1445
    %1481 = vmatprep.subr.bf16.mxu0 0
    %1482 = vmatpush1.bf16.msra.mxu0 %v1446
    %1483 = vmatprep.subr.bf16.mxu0 0
    %1484 = vmatpush1.bf16.msra.mxu0 %v1447
    %1485 = vmatprep.subr.bf16.mxu0 0
    %1486 = vmatpush1.bf16.msra.mxu0 %v1448
    %1487 = vmatprep.subr.bf16.mxu0 0
    %1488 = vmatpush1.bf16.msra.mxu0 %v1449
    %1489 = vmatprep.subr.bf16.mxu0 0
    %1490 = vmatpush1.bf16.msra.mxu0 %v1450
    %1491 = vmatprep.subr.bf16.mxu0 0
    %1492 = vmatpush1.bf16.msra.mxu0 %v1451
    %1493 = vmatprep.subr.bf16.mxu0 0
    %1494 = vmatpush1.bf16.msra.mxu0 %v1452
    %1495 = vmatprep.subr.bf16.mxu0 0
    %1496 = vmatpush1.bf16.msra.mxu0 %v1453
    %1497 = vmatprep.subr.bf16.mxu0 0
    %1498 = vmatpush1.bf16.msra.mxu0 %v1454
    %1499 = vmatprep.subr.bf16.mxu0 0
    %1500 = vmatpush1.bf16.msra.mxu0 %v1455
    %1501 = vmatprep.subr.bf16.mxu0 0
    %1502 = vmatpush1.bf16.msra.mxu0 %v1456
    %1503 = vmatprep.subr.bf16.mxu0 0
    %1504 = vmatpush1.bf16.msra.mxu0 %v1457
    %1505 = vmatprep.subr.bf16.mxu0 0
    %1506 = vmatpush1.bf16.msra.mxu0 %v1458
    %1507 = vmatprep.mubr.bf16.mxu0 %v1340
    %1508 = vmatmul.mubr.bf16.gmra.mrb[0].mxu0 %v1339
    %v1509 = vpop.f32.mrb[0].mxu0
    %v1510 = vadd.f32 0.0, %v1509
    %v1511 = vpop.f32.mrb[0].mxu0
    %v1512 = vpop.f32.mrb[0].mxu0
    %v1513 = vadd.f32 0.0, %v1512
    %v1514 = vpop.f32.mrb[0].mxu0
    %1515 = vmatprep.mubr.bf16.mxu0 %v1344
    %1516 = vmatmul.mubr.bf16.gmra.mrb[0].mxu0 %v1343
    %v1517 = vpop.f32.mrb[0].mxu0
    %v1518 = vadd.f32 0.0, %v1517
    %v1519 = vpop.f32.mrb[0].mxu0
    %v1520 = vpop.f32.mrb[0].mxu0
    %v1521 = vadd.f32 0.0, %v1520
    %v1522 = vpop.f32.mrb[0].mxu0
    %1523 = vdwg.mxu0
    %1524 = vmatprep.subr.bf16.mxu0 0
    %1525 = vmatpush1.bf16.msra.mxu0 %v1443
    %1526 = vmatprep.subr.bf16.mxu0 0
    %1527 = vmatpush1.bf16.msra.mxu0 %v1444
    %1528 = vmatprep.subr.bf16.mxu0 0
    %1529 = vmatpush1.bf16.msra.mxu0 %v1445
    %1530 = vmatprep.subr.bf16.mxu0 0
    %1531 = vmatpush1.bf16.msra.mxu0 %v1446
    %1532 = vmatprep.subr.bf16.mxu0 0
    %1533 = vmatpush1.bf16.msra.mxu0 %v1447
    %1534 = vmatprep.subr.bf16.mxu0 0
    %1535 = vmatpush1.bf16.msra.mxu0 %v1448
    %1536 = vmatprep.subr.bf16.mxu0 0
    %1537 = vmatpush1.bf16.msra.mxu0 %v1449
    %1538 = vmatprep.subr.bf16.mxu0 0
    %1539 = vmatpush1.bf16.msra.mxu0 %v1450
    %1540 = vmatprep.subr.bf16.mxu0 0
    %1541 = vmatpush1.bf16.msra.mxu0 %v1451
    %1542 = vmatprep.subr.bf16.mxu0 0
    %1543 = vmatpush1.bf16.msra.mxu0 %v1452
    %1544 = vmatprep.subr.bf16.mxu0 0
    %1545 = vmatpush1.bf16.msra.mxu0 %v1453
    %1546 = vmatprep.subr.bf16.mxu0 0
    %1547 = vmatpush1.bf16.msra.mxu0 %v1454
    %1548 = vmatprep.subr.bf16.mxu0 0
    %1549 = vmatpush1.bf16.msra.mxu0 %v1455
    %1550 = vmatprep.subr.bf16.mxu0 0
    %1551 = vmatpush1.bf16.msra.mxu0 %v1456
    %1552 = vmatprep.subr.bf16.mxu0 0
    %1553 = vmatpush1.bf16.msra.mxu0 %v1457
    %1554 = vmatprep.subr.bf16.mxu0 0
    %1555 = vmatpush1.bf16.msra.mxu0 %v1458
    %1556 = vmatprep.mubr.bf16.mxu0 %v1342
    %1557 = vmatmul.mubr.bf16.gmra.mrb[0].mxu0 %v1341
    %v1558 = vpop.f32.mrb[0].mxu0
    %v1559 = vadd.f32 0.0, %v1558
    %v1560 = vpop.f32.mrb[0].mxu0
    %v1561 = vpop.f32.mrb[0].mxu0
    %v1562 = vadd.f32 0.0, %v1561
    %v1563 = vpop.f32.mrb[0].mxu0
    %1564 = vmatprep.mubr.bf16.mxu0 %v1346
    %1565 = vmatmul.mubr.bf16.gmra.mrb[0].mxu0 %v1345
    %v1566 = vpop.f32.mrb[0].mxu0
    %v1567 = vadd.f32 0.0, %v1566
    %v1568 = vpop.f32.mrb[0].mxu0
    %v1569 = vpop.f32.mrb[0].mxu0
    %v1570 = vadd.f32 0.0, %v1569
    %v1571 = vpop.f32.mrb[0].mxu0
    %1572 = vdwg.mxu0
    %1577 = vrot.lane.b32.xlu0 %v1559, 64
    %v1578 = vpop.permute.xlu0 %1577
    %1579 = vrot.lane.b32.xlu0 %v1562, 64
    %v1580 = vpop.permute.xlu0 %1579
    %1581 = vrot.lane.b32.xlu0 %v1567, 64
    %v1582 = vpop.permute.xlu0 %1581
    %1583 = vrot.lane.b32.xlu0 %v1570, 64
    %v1584 = vpop.permute.xlu0 %1583
    %vm1589 = vcmask 523264
    %v1590 = vsel %vm1589, %v1510, %v1578
    %v1591 = vsel %vm1589, %v1513, %v1580
    %v1592 = vsel %vm1589, %v1518, %v1582
    %v1593 = vsel %vm1589, %v1521, %v1584
    %v1594 = vld [vmem:[%s12] sm:$0xff]
    %v1595 = vld [vmem:[%s12 + $0x8] sm:$0xff]
    %1597 = vset.pattern.permute.xlu0 0
    %1598 = vperm.xlu0 %1597, %v1594
    %v1599 = vpop.permute.xlu0 %1598
    %1602 = vset.pattern.permute.xlu0 0
    %1603 = vperm.xlu0 %1602, %v1595
    %v1604 = vpop.permute.xlu0 %1603
    %v1606 = vadd.f32 %v1590, %v1599
    %v1607 = vadd.f32 %v1591, %v1604
    %v1608 = vmax.f32 %v1592, 0.0
    %v1609 = vmax.f32 %v1593, 0.0
    %1610 = vrot.lane.b32.xlu0 %v1608, 9
    %v1611 = vpop.permute.xlu0 %1610
    %1612 = vrot.lane.b32.xlu0 %v1609, 9
    %v1613 = vpop.permute.xlu0 %1612
    %v1614 = vlaneseq
    %v1615 = vshrl.u32 %v1614, 7
    %v1616 = vsub.s32 0, %v1615
    %v1617 = vrot.slane %v73, %v1616
    %v1618 = vmul.f32 %v1611, %v1617
    %v1619 = vmul.f32 %v1613, %v1617
    %1620 = vrot.lane.b32.xlu0 %v1608, 8
    %v1621 = vpop.permute.xlu0 %1620
    %1622 = vrot.lane.b32.xlu0 %v1609, 8
    %v1623 = vpop.permute.xlu0 %1622
    %v1624 = vlaneseq
    %v1625 = vshrl.u32 %v1624, 7
    %v1626 = vsub.s32 1, %v1625
    %v1627 = vrot.slane %v73, %v1626
    %v1628 = vmul.f32 %v1621, %v1627
    %v1629 = vmul.f32 %v1623, %v1627
    %1630 = vrot.lane.b32.xlu0 %v1608, 7
    %v1631 = vpop.permute.xlu0 %1630
    %1632 = vrot.lane.b32.xlu0 %v1609, 7
    %v1633 = vpop.permute.xlu0 %1632
    %v1634 = vlaneseq
    %v1635 = vshrl.u32 %v1634, 7
    %v1636 = vsub.s32 2, %v1635
    %v1637 = vrot.slane %v73, %v1636
    %v1638 = vmul.f32 %v1631, %v1637
    %v1639 = vmul.f32 %v1633, %v1637
    %1640 = vrot.lane.b32.xlu0 %v1608, 1
    %v1641 = vpop.permute.xlu0 %1640
    %1642 = vrot.lane.b32.xlu0 %v1609, 1
    %v1643 = vpop.permute.xlu0 %1642
    %v1644 = vlaneseq
    %v1645 = vshrl.u32 %v1644, 7
    %v1646 = vsub.s32 3, %v1645
    %v1647 = vrot.slane %v73, %v1646
    %v1648 = vmul.f32 %v1641, %v1647
    %v1649 = vmul.f32 %v1643, %v1647
    %1650 = vrot.lane.b32.xlu0 %v1608, 127
    %v1651 = vpop.permute.xlu0 %1650
    %1652 = vrot.lane.b32.xlu0 %v1609, 127
    %v1653 = vpop.permute.xlu0 %1652
    %v1654 = vlaneseq
    %v1655 = vshrl.u32 %v1654, 7
    %v1656 = vsub.s32 5, %v1655
    %v1657 = vrot.slane %v73, %v1656
    %v1658 = vmul.f32 %v1651, %v1657
    %v1659 = vmul.f32 %v1653, %v1657
    %1660 = vrot.lane.b32.xlu0 %v1608, 121
    %v1661 = vpop.permute.xlu0 %1660
    %1662 = vrot.lane.b32.xlu0 %v1609, 121
    %v1663 = vpop.permute.xlu0 %1662
    %v1664 = vlaneseq
    %v1665 = vshrl.u32 %v1664, 7
    %v1666 = vsub.s32 6, %v1665
    %v1667 = vrot.slane %v73, %v1666
    %v1668 = vmul.f32 %v1661, %v1667
    %v1669 = vmul.f32 %v1663, %v1667
    %1670 = vrot.lane.b32.xlu0 %v1608, 120
    %v1671 = vpop.permute.xlu0 %1670
    %1672 = vrot.lane.b32.xlu0 %v1609, 120
    %v1673 = vpop.permute.xlu0 %1672
    %v1674 = vlaneseq
    %v1675 = vshrl.u32 %v1674, 7
    %v1676 = vsub.s32 7, %v1675
    %v1677 = vrot.slane %v73, %v1676
    %v1678 = vmul.f32 %v1671, %v1677
    %v1679 = vmul.f32 %v1673, %v1677
    %1680 = vrot.lane.b32.xlu0 %v1608, 119
    %v1681 = vpop.permute.xlu0 %1680
    %1682 = vrot.lane.b32.xlu0 %v1609, 119
    %v1683 = vpop.permute.xlu0 %1682
    %v1684 = vlaneseq
    %v1685 = vshrl.u32 %v1684, 7
    %v1686 = vsub.s32 0, %v1685
    %v1687 = vrot.slane %v74, %v1686
    %v1688 = vmul.f32 %v1681, %v1687
    %v1689 = vmul.f32 %v1683, %v1687
    %v1690 = vpack.c.bf16 %v1619, %v1618
    %v1691 = vpack.c.bf16 %v1629, %v1628
    %v1692 = vpack.c.bf16 %v1639, %v1638
    %v1693 = vpack.c.bf16 %v1649, %v1648
    %v1694 = vpack.c.bf16 %v1609, %v1608
    %v1695 = vpack.c.bf16 %v1659, %v1658
    %v1696 = vpack.c.bf16 %v1669, %v1668
    %v1697 = vpack.c.bf16 %v1679, %v1678
    %v1698 = vpack.c.bf16 %v1689, %v1688
    %v1699 = vld [vmem:[%s10] sm:$0xff]
    %v1700 = vld [vmem:[%s10 + $0x8] sm:$0xff]
    %v1703 = vunpack.c.l.b16 %v1699
    %v1704 = vunpack.c.h.b16 %v1699
    %v1705 = vunpack.c.l.b16 %v1700
    %v1706 = vunpack.c.h.b16 %v1700
    %v1707 = vpack.c.b16 %v1705, %v1703
    %v1708 = vpack.c.b16 %v1706, %v1704
    %vm1710 = vcmask 130048
    %v1712 = vsel %vm1710, %v1708, 0
    %1714 = vmatprep.subr.bf16.mxu0 0
    %1715 = vmatpush1.bf16.msra.mxu0 %v1690
    %1716 = vmatprep.subr.bf16.mxu0 0
    %1717 = vmatpush1.bf16.msra.mxu0 %v1691
    %1718 = vmatprep.subr.bf16.mxu0 0
    %1719 = vmatpush1.bf16.msra.mxu0 %v1692
    %1720 = vmatprep.subr.bf16.mxu0 0
    %1721 = vmatpush1.bf16.msra.mxu0 %v1693
    %1722 = vmatprep.subr.bf16.mxu0 0
    %1723 = vmatpush1.bf16.msra.mxu0 %v1694
    %1724 = vmatprep.subr.bf16.mxu0 0
    %1725 = vmatpush1.bf16.msra.mxu0 %v1695
    %1726 = vmatprep.subr.bf16.mxu0 0
    %1727 = vmatpush1.bf16.msra.mxu0 %v1696
    %1728 = vmatprep.subr.bf16.mxu0 0
    %1729 = vmatpush1.bf16.msra.mxu0 %v1697
    %1730 = vmatprep.subr.bf16.mxu0 0
    %1731 = vmatpush1.bf16.msra.mxu0 %v1698
    %1732 = vmatprep.subr.bf16.mxu0 0
    %1733 = vmatpush1.bf16.msra.mxu0 0
    %1734 = vmatprep.subr.bf16.mxu0 0
    %1735 = vmatpush1.bf16.msra.mxu0 0
    %1736 = vmatprep.subr.bf16.mxu0 0
    %1737 = vmatpush1.bf16.msra.mxu0 0
    %1738 = vmatprep.subr.bf16.mxu0 0
    %1739 = vmatpush1.bf16.msra.mxu0 0
    %1740 = vmatprep.subr.bf16.mxu0 0
    %1741 = vmatpush1.bf16.msra.mxu0 0
    %1742 = vmatprep.subr.bf16.mxu0 0
    %1743 = vmatpush1.bf16.msra.mxu0 0
    %1744 = vmatprep.subr.bf16.mxu0 0
    %1745 = vmatpush1.bf16.msra.mxu0 0
    %1746 = vmatprep.mubr.bf16.mxu0 %v1712
    %1747 = vmatmul.mubr.bf16.gmra.mrb[0].mxu0 %v1707
    %v1748 = vpop.f32.mrb[0].mxu0
    %v1749 = vadd.f32 %v1606, %v1748
    %v1750 = vpop.f32.mrb[0].mxu0
    %v1751 = vpop.f32.mrb[0].mxu0
    %v1752 = vadd.f32 %v1607, %v1751
    %v1753 = vpop.f32.mrb[0].mxu0
    %1754 = vdwg.mxu0
    %v1755 = vmax.f32 %v1749, 0.0
    %v1756 = vmax.f32 %v1752, 0.0
    %v1757 = vld [vmem:[%s4] sm:$0x3]
    %1758 = vmatprep.subr.mxu0 0.0
    %1759 = vmatpush1.xpose.msra.mxu0 %v1755
    %1760 = vmatprep.subr.mxu0 0.0
    %1761 = vmatpush1.xpose.msra.mxu0 %v1756
    %1762 = vmatprep.subr.mxu0 0.0
    %1763 = vmatpush1.xpose.msra.mxu0 0.0
    %1764 = vmatprep.subr.mxu0 0.0
    %1765 = vmatpush1.xpose.msra.mxu0 0.0
    %1766 = vmatprep.subr.mxu0 0.0
    %1767 = vmatpush1.xpose.msra.mxu0 0.0
    %1768 = vmatprep.subr.mxu0 0.0
    %1769 = vmatpush1.xpose.msra.mxu0 0.0
    %1770 = vmatprep.subr.mxu0 0.0
    %1771 = vmatpush1.xpose.msra.mxu0 0.0
    %1772 = vmatprep.subr.mxu0 0.0
    %1773 = vmatpush1.xpose.msra.mxu0 0.0
    %1774 = vmatprep.subr.mxu0 0.0
    %1775 = vmatpush1.xpose.msra.mxu0 0.0
    %1776 = vmatprep.subr.mxu0 0.0
    %1777 = vmatpush1.xpose.msra.mxu0 0.0
    %1778 = vmatprep.subr.mxu0 0.0
    %1779 = vmatpush1.xpose.msra.mxu0 0.0
    %1780 = vmatprep.subr.mxu0 0.0
    %1781 = vmatpush1.xpose.msra.mxu0 0.0
    %1782 = vmatprep.subr.mxu0 0.0
    %1783 = vmatpush1.xpose.msra.mxu0 0.0
    %1784 = vmatprep.subr.mxu0 0.0
    %1785 = vmatpush1.xpose.msra.mxu0 0.0
    %1786 = vmatprep.subr.mxu0 0.0
    %1787 = vmatpush1.xpose.msra.mxu0 0.0
    %1788 = vmatprep.subr.mxu0 0.0
    %1789 = vmatpush1.xpose.msra.mxu0 0.0
    %1790 = vmatprep.subr.mxu0 0.0
    %1791 = vmatpush1.xpose.msra.mxu0 0.0
    %1792 = vmatprep.subr.mxu0 0.0
    %1793 = vmatpush1.xpose.msra.mxu0 0.0
    %1794 = vmatprep.subr.mxu0 0.0
    %1795 = vmatpush1.xpose.msra.mxu0 0.0
    %1796 = vmatprep.subr.mxu0 0.0
    %1797 = vmatpush1.xpose.msra.mxu0 0.0
    %1798 = vmatprep.subr.mxu0 0.0
    %1799 = vmatpush1.xpose.msra.mxu0 0.0
    %1800 = vmatprep.subr.mxu0 0.0
    %1801 = vmatpush1.xpose.msra.mxu0 0.0
    %1802 = vmatprep.subr.mxu0 0.0
    %1803 = vmatpush1.xpose.msra.mxu0 0.0
    %1804 = vmatprep.subr.mxu0 0.0
    %1805 = vmatpush1.xpose.msra.mxu0 0.0
    %1806 = vmatprep.subr.mxu0 0.0
    %1807 = vmatpush1.xpose.msra.mxu0 0.0
    %1808 = vmatprep.subr.mxu0 0.0
    %1809 = vmatpush1.xpose.msra.mxu0 0.0
    %1810 = vmatprep.subr.mxu0 0.0
    %1811 = vmatpush1.xpose.msra.mxu0 0.0
    %1812 = vmatprep.subr.mxu0 0.0
    %1813 = vmatpush1.xpose.msra.mxu0 0.0
    %1814 = vmatprep.subr.mxu0 0.0
    %1815 = vmatpush1.xpose.msra.mxu0 0.0
    %1816 = vmatprep.subr.mxu0 0.0
    %1817 = vmatpush1.xpose.msra.mxu0 0.0
    %1818 = vmatprep.subr.mxu0 0.0
    %1819 = vmatpush1.xpose.msra.mxu0 0.0
    %1820 = vmatprep.subr.mxu0 0.0
    %1821 = vmatpush1.xpose.msra.mxu0 0.0
    %1822 = vmatprep.mubr.f32.mxu0 0.0
    %1823 = vmatmul.mubr.f32.gmra.mrb[0].mxu0 %v1757
    %v1824 = vpop.f32.mrb[0].mxu0
    %v1825 = vadd.f32 0.0, %v1824
    %v1826 = vpop.f32.mrb[0].mxu0
    %1827 = vdwg.mxu0
    %v1828 = vld [vmem:[%s13] sm:$0xff]
    %v1829 = vld [vmem:[%s13 + $0x8] sm:$0xff]
    %v1830 = vld [vmem:[%s14] sm:$0x1]
    %v1832 = vlaneseq
    %v1833 = vshrl.u32 %v1832, 7
    %v1834 = vsub.s32 0, %v1833
    %v1835 = vrot.slane %v1830, %v1834
    %v1838 = vsel %vm1710, %v1825, 0
    %1840 = vmatprep.subr.mxu0 0.0
    %1841 = vmatpush1.msra.mxu0 %v1828
    %1842 = vmatprep.subr.mxu0 0.0
    %1843 = vmatpush1.msra.mxu0 %v1829
    %1844 = vmatprep.subr.mxu0 0.0
    %1845 = vmatpush1.msra.mxu0 0.0
    %1846 = vmatprep.subr.mxu0 0.0
    %1847 = vmatpush1.msra.mxu0 0.0
    %1848 = vmatprep.subr.mxu0 0.0
    %1849 = vmatpush1.msra.mxu0 0.0
    %1850 = vmatprep.subr.mxu0 0.0
    %1851 = vmatpush1.msra.mxu0 0.0
    %1852 = vmatprep.subr.mxu0 0.0
    %1853 = vmatpush1.msra.mxu0 0.0
    %1854 = vmatprep.subr.mxu0 0.0
    %1855 = vmatpush1.msra.mxu0 0.0
    %1856 = vmatprep.subr.mxu0 0.0
    %1857 = vmatpush1.msra.mxu0 0.0
    %1858 = vmatprep.subr.mxu0 0.0
    %1859 = vmatpush1.msra.mxu0 0.0
    %1860 = vmatprep.subr.mxu0 0.0
    %1861 = vmatpush1.msra.mxu0 0.0
    %1862 = vmatprep.subr.mxu0 0.0
    %1863 = vmatpush1.msra.mxu0 0.0
    %1864 = vmatprep.subr.mxu0 0.0
    %1865 = vmatpush1.msra.mxu0 0.0
    %1866 = vmatprep.subr.mxu0 0.0
    %1867 = vmatpush1.msra.mxu0 0.0
    %1868 = vmatprep.subr.mxu0 0.0
    %1869 = vmatpush1.msra.mxu0 0.0
    %1870 = vmatprep.subr.mxu0 0.0
    %1871 = vmatpush1.msra.mxu0 0.0
    %1872 = vmatprep.subr.mxu0 0.0
    %1873 = vmatpush1.msra.mxu0 0.0
    %1874 = vmatprep.subr.mxu0 0.0
    %1875 = vmatpush1.msra.mxu0 0.0
    %1876 = vmatprep.subr.mxu0 0.0
    %1877 = vmatpush1.msra.mxu0 0.0
    %1878 = vmatprep.subr.mxu0 0.0
    %1879 = vmatpush1.msra.mxu0 0.0
    %1880 = vmatprep.subr.mxu0 0.0
    %1881 = vmatpush1.msra.mxu0 0.0
    %1882 = vmatprep.subr.mxu0 0.0
    %1883 = vmatpush1.msra.mxu0 0.0
    %1884 = vmatprep.subr.mxu0 0.0
    %1885 = vmatpush1.msra.mxu0 0.0
    %1886 = vmatprep.subr.mxu0 0.0
    %1887 = vmatpush1.msra.mxu0 0.0
    %1888 = vmatprep.subr.mxu0 0.0
    %1889 = vmatpush1.msra.mxu0 0.0
    %1890 = vmatprep.subr.mxu0 0.0
    %1891 = vmatpush1.msra.mxu0 0.0
    %1892 = vmatprep.subr.mxu0 0.0
    %1893 = vmatpush1.msra.mxu0 0.0
    %1894 = vmatprep.subr.mxu0 0.0
    %1895 = vmatpush1.msra.mxu0 0.0
    %1896 = vmatprep.subr.mxu0 0.0
    %1897 = vmatpush1.msra.mxu0 0.0
    %1898 = vmatprep.subr.mxu0 0.0
    %1899 = vmatpush1.msra.mxu0 0.0
    %1900 = vmatprep.subr.mxu0 0.0
    %1901 = vmatpush1.msra.mxu0 0.0
    %1902 = vmatprep.subr.mxu0 0.0
    %1903 = vmatpush1.msra.mxu0 0.0
    %1904 = vmatprep.mubr.f32.mxu0 0.0
    %1905 = vmatmul.mubr.f32.gmra.mrb[0].mxu0 %v1838
    %v1906 = vpop.f32.mrb[0].mxu0
    %v1907 = vadd.f32 %v1835, %v1906
    %v1908 = vpop.f32.mrb[0].mxu0
    %1909 = vdwg.mxu0
    %vm1910 = vcmask 74752
    %1911 = vst.msk [vmem:[#allocation2] sm:$0x3] %vm1910, %v1907
    // Predicated region
    $region62: #{resnet_forward.1} parent=1 // pred_check
      _
    $region63: #{resnet_forward.1} parent=1 // pred_check_branch
      %1913 = sbr.rel (0) target = $region65
    $region64: #{resnet_forward.1} parent=1 // pred_region
      %s1915 = ssub.s32 32, 32
      %1916 = vsyncadd [#allocation3], %s1915
      %s1918 = sshll.u32 [#allocation2], 4
      %s1919 = int_to_ptr.vmem [resolvable:$true] %s1918
      %1921 = dma.vmem_to_hbm [thread:$0]  %s1919, 32, %s15, [#allocation3]
    $region65: #{resnet_forward.1} parent=1 // pred_fallthru
      _
    // Predicated region
    $region66: #{resnet_forward.1} parent=1 // pred_check
      _
    $region67: #{resnet_forward.1} parent=1 // pred_check_branch
      %1923 = sbr.rel (0) target = $region69
    $region68: #{resnet_forward.1} parent=1 // pred_region
      %1924 = dma.done [#allocation3], 32
    $region69: #{resnet_forward.1} parent=1 // pred_fallthru
      _
    %1925 = vsyncpa [#allocation3], 1

</llo_original>
